<compile_context>
chip_gen: v7x
topology: tpu7x:2x2x1
jax: 0.10.0
libtpu: 0.0.40
codegen_flags: <defaults>
</compile_context>

<pallas_src>
import jax
import jax.numpy as jnp
from jax.experimental import pallas as pl
from jax.experimental.pallas import tpu as pltpu  # noqa: F401  (not needed: no scratch/DMA)


SUBLANES = 8    # f32 sublane count -> batch padding target
LANES = 128     # lane width -> fc output padding target


# --------------------------- fused forward kernel ----------------------------
def _make_fused_kernel(T, Bp, H, num_layers):
    """Kernel args: (x_flat, [w_ih, w_hh, b] * L, fc_w, fc_b) -> logits_padded.

    Layouts (all pre-arranged in the wrapper):
      x_flat : (T*Bp, I)      time-major, batch padded to Bp
      w_ih   : (in, 4H)       gate columns ordered (i, f, o, g)
      w_hh   : (H, 4H)        gate columns ordered (i, f, o, g)
      b      : (1, 4H)        b_ih + b_hh, ordered (i, f, o, g)
      fc_w   : (H, Cp)        lane-padded
      fc_b   : (1, Cp)        lane-padded
      out    : (Bp, Cp)
    """

    def kernel(*refs):
        x_ref = refs[0]
        layer_refs = refs[1:1 + 3 * num_layers]
        fc_w_ref = refs[1 + 3 * num_layers]
        fc_b_ref = refs[2 + 3 * num_layers]
        out_ref = refs[3 + 3 * num_layers]

        def cell(gates, h_prev, c_prev, first):
            # Gate order (i, f, o | g): one sigmoid over 3H lanes, one tanh over H lanes.
            sig = jax.nn.sigmoid(gates[:, :3 * H])
            i_g = sig[:, 0 * H:1 * H]
            f_g = sig[:, 1 * H:2 * H]
            o_g = sig[:, 2 * H:3 * H]
            g_g = jnp.tanh(gates[:, 3 * H:4 * H])
            if first:
                c_new = i_g * g_g                      # c_prev == 0 (peeled step)
            else:
                c_new = f_g * c_prev + i_g * g_g
            h_new = o_g * jnp.tanh(c_new)
            return h_new, c_new

        src = x_ref[...]                               # (T*Bp, I) then (T*Bp, H)
        h = None
        for l in range(num_layers):
            w_ih = layer_refs[3 * l][...]              # (in, 4H)
            w_hh = layer_refs[3 * l + 1][...]          # (H, 4H)
            b = layer_refs[3 * l + 2][...]             # (1, 4H)

            # Hoisted input projection for the whole sequence: one big matmul.
            gates_x = jnp.dot(src, w_ih, preferred_element_type=jnp.float32) + b  # (T*Bp, 4H)

            hs = []
            # ---- t = 0 peeled: h == c == 0, no recurrent matmul ----
            h, c = cell(gates_x[0:Bp, :], None, None, first=True)
            hs.append(h)
            # ---- fully-unrolled recurrence; only h@W_hh is on the serial chain ----
            for t in range(1, T):
                gates = gates_x[t * Bp:(t + 1) * Bp, :] + jnp.dot(
                    h, w_hh, preferred_element_type=jnp.float32)       # (Bp, 4H)
                h, c = cell(gates, h, c, first=False)
                hs.append(h)

            if l < num_layers - 1:
                # Keep the inter-layer sequence in vregs (no VMEM round-trip).
                src = jnp.concatenate(hs, axis=0)      # (T*Bp, H)

        # Dropout(p=0.3) is identity in eval mode; FC head (lane-padded output).
        out_ref[...] = (
            jnp.dot(h, fc_w_ref[...], preferred_element_type=jnp.float32) + fc_b_ref[...]
        )

    return kernel


def lstm_classifier_forward(x, params):
    """x: (B, T, I) batch_first, like the PyTorch module. Returns (B, num_classes)."""
    B, T, I = x.shape
    H = params["lstm"][0]["w_hh"].shape[0]
    C = params["fc_w"].shape[1]
    L = len(params["lstm"])

    # ---- wrapper-side layout plumbing (free relative to the kernel) ----
    Bp = max(SUBLANES, ((B + SUBLANES - 1) // SUBLANES) * SUBLANES)   # pad batch to sublanes
    Cp = max(LANES, ((C + LANES - 1) // LANES) * LANES)               # pad classes to lanes

    x_pad = jnp.zeros((Bp, T, I), jnp.float32).at[:B].set(x)
    xs = jnp.transpose(x_pad, (1, 0, 2)).reshape(T * Bp, I)           # time-major, flat

    def reorder_ifog_to_ifog_swapped(w):
        # PyTorch gate order (i,f,g,o) -> kernel order (i,f,o,g) along last axis.
        return jnp.concatenate([w[..., :2 * H], w[..., 3 * H:4 * H], w[..., 2 * H:3 * H]],
                               axis=-1)

    args = [xs]
    for layer in params["lstm"]:
        args += [reorder_ifog_to_ifog_swapped(layer["w_ih"]),
                 reorder_ifog_to_ifog_swapped(layer["w_hh"]),
                 reorder_ifog_to_ifog_swapped(layer["b"])]
    fc_w = jnp.zeros((H, Cp), jnp.float32).at[:, :C].set(params["fc_w"])
    fc_b = jnp.zeros((1, Cp), jnp.float32).at[:, :C].set(params["fc_b"])
    args += [fc_w, fc_b]

    # No grid: everything (~100 KB) is resident in VMEM for one kernel invocation.
    in_specs = [pl.BlockSpec(a.shape, lambda: (0, 0)) for a in args]

    kernel = _make_fused_kernel(T=T, Bp=Bp, H=H, num_layers=L)

    out_pad = pl.pallas_call(
        kernel,
        out_shape=jax.ShapeDtypeStruct((Bp, Cp), jnp.float32),
        in_specs=in_specs,
        out_specs=pl.BlockSpec((Bp, Cp), lambda: (0, 0)),
    )(*args)

    return out_pad[:B, :C]


# ------------------------------ param init -----------------------------------
def init_params(key, input_size, hidden_size, num_layers, num_classes):
    """PyTorch-like U(-1/sqrt(H), 1/sqrt(H)) init, stored pre-transposed in PyTorch
    gate order (i,f,g,o): w_ih (in,4H), w_hh (H,4H), b (1,4H)=b_ih+b_hh,
    fc_w (H,C), fc_b (1,C)."""
    H = hidden_size
    bound = 1.0 / (H ** 0.5)
    params = {"lstm": []}
    for layer in range(num_layers):
        in_sz = input_size if layer == 0 else H
        key, k1, k2, k3, k4 = jax.random.split(key, 5)
        w_ih = jax.random.uniform(k1, (in_sz, 4 * H), jnp.float32, -bound, bound)
        w_hh = jax.random.uniform(k2, (H, 4 * H), jnp.float32, -bound, bound)
        b_ih = jax.random.uniform(k3, (4 * H,), jnp.float32, -bound, bound)
        b_hh = jax.random.uniform(k4, (4 * H,), jnp.float32, -bound, bound)
        params["lstm"].append(
            {"w_ih": w_ih, "w_hh": w_hh, "b": (b_ih + b_hh).reshape(1, -1)}
        )
    key, k1, k2 = jax.random.split(key, 3)
    params["fc_w"] = jax.random.uniform(k1, (H, num_classes), jnp.float32, -bound, bound)
    params["fc_b"] = jax.random.uniform(k2, (1, num_classes), jnp.float32, -bound, bound)
    return params


# --------------------------- pure-JAX reference -------------------------------
def _reference_forward(x, params):
    """Uses the canonical (i,f,g,o) params directly — independent of kernel layout."""
    B, T, _ = x.shape
    H = params["lstm"][0]["w_hh"].shape[0]
    seq = jnp.transpose(x, (1, 0, 2))  # (T, B, I)
    for layer in params["lstm"]:
        w_ih, w_hh, b = layer["w_ih"], layer["w_hh"], layer["b"]

        def step(carry, x_t):
            h, c = carry
            gates = x_t @ w_ih + h @ w_hh + b[0]
            i_g = jax.nn.sigmoid(gates[:, 0 * H:1 * H])
            f_g = jax.nn.sigmoid(gates[:, 1 * H:2 * H])
            g_g = jnp.tanh(gates[:, 2 * H:3 * H])
            o_g = jax.nn.sigmoid(gates[:, 3 * H:4 * H])
            c = f_g * c + i_g * g_g
            h = o_g * jnp.tanh(c)
            return (h, c), h

        (_, _), seq = jax.lax.scan(
            step, (jnp.zeros((B, H), jnp.float32), jnp.zeros((B, H), jnp.float32)), seq
        )
    return seq[-1] @ params["fc_w"] + params["fc_b"]


# ----------------------------------- main -------------------------------------
if __name__ == "__main__":
    INPUT_SIZE = 16
    HIDDEN_SIZE = 32
    NUM_LAYERS = 2
    NUM_CLASSES = 5
    BATCH = 2
    SEQ = 8

    key = jax.random.PRNGKey(0)
    key, xk = jax.random.split(key)
    x = jax.random.normal(xk, (BATCH, SEQ, INPUT_SIZE), dtype=jnp.float32)

    params = init_params(key, INPUT_SIZE, HIDDEN_SIZE, NUM_LAYERS, NUM_CLASSES)

    logits = lstm_classifier_forward(x, params)
    jax.block_until_ready(logits)

    assert logits.shape == (BATCH, NUM_CLASSES)
    assert bool(jnp.all(jnp.isfinite(logits)))

    ref = _reference_forward(x, params)
    assert bool(jnp.allclose(logits, ref, atol=5e-2, rtol=5e-2))

    print("KERNEL_OK")
</pallas_src>

<mosaic_0001>
module attributes {stable_mosaic.version = 11 : i64} {
  func.func @kernel(%arg0: memref<64x16xf32, #tpu.memory_space<vmem>>, %arg1: memref<16x128xf32, #tpu.memory_space<vmem>>, %arg2: memref<32x128xf32, #tpu.memory_space<vmem>>, %arg3: memref<1x128xf32, #tpu.memory_space<vmem>>, %arg4: memref<32x128xf32, #tpu.memory_space<vmem>>, %arg5: memref<32x128xf32, #tpu.memory_space<vmem>>, %arg6: memref<1x128xf32, #tpu.memory_space<vmem>>, %arg7: memref<32x128xf32, #tpu.memory_space<vmem>>, %arg8: memref<1x128xf32, #tpu.memory_space<vmem>>, %arg9: memref<8x128xf32, #tpu.memory_space<vmem>>) attributes {dimension_semantics = [], scalar_prefetch = 0 : i64, scratch_operands = 0 : i64, tpu.core_type = #tpu.core_type<tc>} {
    %c0 = arith.constant 0 : index
    %c0_0 = arith.constant 0 : index
    %0 = vector.load %arg0[%c0, %c0_0] : memref<64x16xf32, #tpu.memory_space<vmem>>, vector<64x16xf32>
    %c0_1 = arith.constant 0 : index
    %c0_2 = arith.constant 0 : index
    %1 = vector.load %arg1[%c0_1, %c0_2] : memref<16x128xf32, #tpu.memory_space<vmem>>, vector<16x128xf32>
    %c0_3 = arith.constant 0 : index
    %c0_4 = arith.constant 0 : index
    %2 = vector.load %arg2[%c0_3, %c0_4] : memref<32x128xf32, #tpu.memory_space<vmem>>, vector<32x128xf32>
    %c0_5 = arith.constant 0 : index
    %c0_6 = arith.constant 0 : index
    %3 = vector.load %arg3[%c0_5, %c0_6] : memref<1x128xf32, #tpu.memory_space<vmem>>, vector<1x128xf32>
    %cst = arith.constant dense<0.000000e+00> : vector<64x128xf32>
    %4 = tpu.matmul %0, %1, %cst {dimension_numbers = #tpu.dot_dimension_numbers<[1], [0], [0], [1], [0, 0, 1, 1], [], []>} : vector<64x16xf32>, vector<16x128xf32>, vector<64x128xf32> -> vector<64x128xf32>
    %5 = vector.broadcast %3 : vector<1x128xf32> to vector<64x128xf32>
    %6 = arith.addf %4, %5 : vector<64x128xf32>
    %7 = vector.extract_strided_slice %6 {offsets = [0, 0], sizes = [8, 128], strides = [1, 1]} : vector<64x128xf32> to vector<8x128xf32>
    %8 = vector.extract_strided_slice %7 {offsets = [0, 0], sizes = [8, 96], strides = [1, 1]} : vector<8x128xf32> to vector<8x96xf32>
    %9 = arith.negf %8 : vector<8x96xf32>
    %10 = math.exp %9 : vector<8x96xf32>
    %cst_7 = arith.constant 1.000000e+00 : f32
    %11 = vector.broadcast %cst_7 : f32 to vector<8x96xf32>
    %12 = arith.addf %11, %10 : vector<8x96xf32>
    %13 = arith.divf %11, %12 : vector<8x96xf32>
    %14 = vector.extract_strided_slice %13 {offsets = [0, 0], sizes = [8, 32], strides = [1, 1]} : vector<8x96xf32> to vector<8x32xf32>
    %15 = vector.extract_strided_slice %13 {offsets = [0, 64], sizes = [8, 32], strides = [1, 1]} : vector<8x96xf32> to vector<8x32xf32>
    %16 = vector.extract_strided_slice %7 {offsets = [0, 96], sizes = [8, 32], strides = [1, 1]} : vector<8x128xf32> to vector<8x32xf32>
    %17 = math.tanh %16 : vector<8x32xf32>
    %18 = arith.mulf %14, %17 : vector<8x32xf32>
    %19 = math.tanh %18 : vector<8x32xf32>
    %20 = arith.mulf %15, %19 : vector<8x32xf32>
    %21 = vector.extract_strided_slice %6 {offsets = [8, 0], sizes = [8, 128], strides = [1, 1]} : vector<64x128xf32> to vector<8x128xf32>
    %cst_8 = arith.constant dense<0.000000e+00> : vector<8x128xf32>
    %22 = tpu.matmul %20, %2, %cst_8 {dimension_numbers = #tpu.dot_dimension_numbers<[1], [0], [0], [1], [0, 0, 1, 1], [], []>} : vector<8x32xf32>, vector<32x128xf32>, vector<8x128xf32> -> vector<8x128xf32>
    %23 = arith.addf %21, %22 : vector<8x128xf32>
    %24 = vector.extract_strided_slice %23 {offsets = [0, 0], sizes = [8, 96], strides = [1, 1]} : vector<8x128xf32> to vector<8x96xf32>
    %25 = arith.negf %24 : vector<8x96xf32>
    %26 = math.exp %25 : vector<8x96xf32>
    %cst_9 = arith.constant 1.000000e+00 : f32
    %27 = vector.broadcast %cst_9 : f32 to vector<8x96xf32>
    %28 = arith.addf %27, %26 : vector<8x96xf32>
    %29 = arith.divf %27, %28 : vector<8x96xf32>
    %30 = vector.extract_strided_slice %29 {offsets = [0, 0], sizes = [8, 32], strides = [1, 1]} : vector<8x96xf32> to vector<8x32xf32>
    %31 = vector.extract_strided_slice %29 {offsets = [0, 32], sizes = [8, 32], strides = [1, 1]} : vector<8x96xf32> to vector<8x32xf32>
    %32 = vector.extract_strided_slice %29 {offsets = [0, 64], sizes = [8, 32], strides = [1, 1]} : vector<8x96xf32> to vector<8x32xf32>
    %33 = vector.extract_strided_slice %23 {offsets = [0, 96], sizes = [8, 32], strides = [1, 1]} : vector<8x128xf32> to vector<8x32xf32>
    %34 = math.tanh %33 : vector<8x32xf32>
    %35 = arith.mulf %31, %18 : vector<8x32xf32>
    %36 = arith.mulf %30, %34 : vector<8x32xf32>
    %37 = arith.addf %35, %36 : vector<8x32xf32>
    %38 = math.tanh %37 : vector<8x32xf32>
    %39 = arith.mulf %32, %38 : vector<8x32xf32>
    %40 = vector.extract_strided_slice %6 {offsets = [16, 0], sizes = [8, 128], strides = [1, 1]} : vector<64x128xf32> to vector<8x128xf32>
    %cst_10 = arith.constant dense<0.000000e+00> : vector<8x128xf32>
    %41 = tpu.matmul %39, %2, %cst_10 {dimension_numbers = #tpu.dot_dimension_numbers<[1], [0], [0], [1], [0, 0, 1, 1], [], []>} : vector<8x32xf32>, vector<32x128xf32>, vector<8x128xf32> -> vector<8x128xf32>
    %42 = arith.addf %40, %41 : vector<8x128xf32>
    %43 = vector.extract_strided_slice %42 {offsets = [0, 0], sizes = [8, 96], strides = [1, 1]} : vector<8x128xf32> to vector<8x96xf32>
    %44 = arith.negf %43 : vector<8x96xf32>
    %45 = math.exp %44 : vector<8x96xf32>
    %cst_11 = arith.constant 1.000000e+00 : f32
    %46 = vector.broadcast %cst_11 : f32 to vector<8x96xf32>
    %47 = arith.addf %46, %45 : vector<8x96xf32>
    %48 = arith.divf %46, %47 : vector<8x96xf32>
    %49 = vector.extract_strided_slice %48 {offsets = [0, 0], sizes = [8, 32], strides = [1, 1]} : vector<8x96xf32> to vector<8x32xf32>
    %50 = vector.extract_strided_slice %48 {offsets = [0, 32], sizes = [8, 32], strides = [1, 1]} : vector<8x96xf32> to vector<8x32xf32>
    %51 = vector.extract_strided_slice %48 {offsets = [0, 64], sizes = [8, 32], strides = [1, 1]} : vector<8x96xf32> to vector<8x32xf32>
    %52 = vector.extract_strided_slice %42 {offsets = [0, 96], sizes = [8, 32], strides = [1, 1]} : vector<8x128xf32> to vector<8x32xf32>
    %53 = math.tanh %52 : vector<8x32xf32>
    %54 = arith.mulf %50, %37 : vector<8x32xf32>
    %55 = arith.mulf %49, %53 : vector<8x32xf32>
    %56 = arith.addf %54, %55 : vector<8x32xf32>
    %57 = math.tanh %56 : vector<8x32xf32>
    %58 = arith.mulf %51, %57 : vector<8x32xf32>
    %59 = vector.extract_strided_slice %6 {offsets = [24, 0], sizes = [8, 128], strides = [1, 1]} : vector<64x128xf32> to vector<8x128xf32>
    %cst_12 = arith.constant dense<0.000000e+00> : vector<8x128xf32>
    %60 = tpu.matmul %58, %2, %cst_12 {dimension_numbers = #tpu.dot_dimension_numbers<[1], [0], [0], [1], [0, 0, 1, 1], [], []>} : vector<8x32xf32>, vector<32x128xf32>, vector<8x128xf32> -> vector<8x128xf32>
    %61 = arith.addf %59, %60 : vector<8x128xf32>
    %62 = vector.extract_strided_slice %61 {offsets = [0, 0], sizes = [8, 96], strides = [1, 1]} : vector<8x128xf32> to vector<8x96xf32>
    %63 = arith.negf %62 : vector<8x96xf32>
    %64 = math.exp %63 : vector<8x96xf32>
    %cst_13 = arith.constant 1.000000e+00 : f32
    %65 = vector.broadcast %cst_13 : f32 to vector<8x96xf32>
    %66 = arith.addf %65, %64 : vector<8x96xf32>
    %67 = arith.divf %65, %66 : vector<8x96xf32>
    %68 = vector.extract_strided_slice %67 {offsets = [0, 0], sizes = [8, 32], strides = [1, 1]} : vector<8x96xf32> to vector<8x32xf32>
    %69 = vector.extract_strided_slice %67 {offsets = [0, 32], sizes = [8, 32], strides = [1, 1]} : vector<8x96xf32> to vector<8x32xf32>
    %70 = vector.extract_strided_slice %67 {offsets = [0, 64], sizes = [8, 32], strides = [1, 1]} : vector<8x96xf32> to vector<8x32xf32>
    %71 = vector.extract_strided_slice %61 {offsets = [0, 96], sizes = [8, 32], strides = [1, 1]} : vector<8x128xf32> to vector<8x32xf32>
    %72 = math.tanh %71 : vector<8x32xf32>
    %73 = arith.mulf %69, %56 : vector<8x32xf32>
    %74 = arith.mulf %68, %72 : vector<8x32xf32>
    %75 = arith.addf %73, %74 : vector<8x32xf32>
    %76 = math.tanh %75 : vector<8x32xf32>
    %77 = arith.mulf %70, %76 : vector<8x32xf32>
    %78 = vector.extract_strided_slice %6 {offsets = [32, 0], sizes = [8, 128], strides = [1, 1]} : vector<64x128xf32> to vector<8x128xf32>
    %cst_14 = arith.constant dense<0.000000e+00> : vector<8x128xf32>
    %79 = tpu.matmul %77, %2, %cst_14 {dimension_numbers = #tpu.dot_dimension_numbers<[1], [0], [0], [1], [0, 0, 1, 1], [], []>} : vector<8x32xf32>, vector<32x128xf32>, vector<8x128xf32> -> vector<8x128xf32>
    %80 = arith.addf %78, %79 : vector<8x128xf32>
    %81 = vector.extract_strided_slice %80 {offsets = [0, 0], sizes = [8, 96], strides = [1, 1]} : vector<8x128xf32> to vector<8x96xf32>
    %82 = arith.negf %81 : vector<8x96xf32>
    %83 = math.exp %82 : vector<8x96xf32>
    %cst_15 = arith.constant 1.000000e+00 : f32
    %84 = vector.broadcast %cst_15 : f32 to vector<8x96xf32>
    %85 = arith.addf %84, %83 : vector<8x96xf32>
    %86 = arith.divf %84, %85 : vector<8x96xf32>
    %87 = vector.extract_strided_slice %86 {offsets = [0, 0], sizes = [8, 32], strides = [1, 1]} : vector<8x96xf32> to vector<8x32xf32>
    %88 = vector.extract_strided_slice %86 {offsets = [0, 32], sizes = [8, 32], strides = [1, 1]} : vector<8x96xf32> to vector<8x32xf32>
    %89 = vector.extract_strided_slice %86 {offsets = [0, 64], sizes = [8, 32], strides = [1, 1]} : vector<8x96xf32> to vector<8x32xf32>
    %90 = vector.extract_strided_slice %80 {offsets = [0, 96], sizes = [8, 32], strides = [1, 1]} : vector<8x128xf32> to vector<8x32xf32>
    %91 = math.tanh %90 : vector<8x32xf32>
    %92 = arith.mulf %88, %75 : vector<8x32xf32>
    %93 = arith.mulf %87, %91 : vector<8x32xf32>
    %94 = arith.addf %92, %93 : vector<8x32xf32>
    %95 = math.tanh %94 : vector<8x32xf32>
    %96 = arith.mulf %89, %95 : vector<8x32xf32>
    %97 = vector.extract_strided_slice %6 {offsets = [40, 0], sizes = [8, 128], strides = [1, 1]} : vector<64x128xf32> to vector<8x128xf32>
    %cst_16 = arith.constant dense<0.000000e+00> : vector<8x128xf32>
    %98 = tpu.matmul %96, %2, %cst_16 {dimension_numbers = #tpu.dot_dimension_numbers<[1], [0], [0], [1], [0, 0, 1, 1], [], []>} : vector<8x32xf32>, vector<32x128xf32>, vector<8x128xf32> -> vector<8x128xf32>
    %99 = arith.addf %97, %98 : vector<8x128xf32>
    %100 = vector.extract_strided_slice %99 {offsets = [0, 0], sizes = [8, 96], strides = [1, 1]} : vector<8x128xf32> to vector<8x96xf32>
    %101 = arith.negf %100 : vector<8x96xf32>
    %102 = math.exp %101 : vector<8x96xf32>
    %cst_17 = arith.constant 1.000000e+00 : f32
    %103 = vector.broadcast %cst_17 : f32 to vector<8x96xf32>
    %104 = arith.addf %103, %102 : vector<8x96xf32>
    %105 = arith.divf %103, %104 : vector<8x96xf32>
    %106 = vector.extract_strided_slice %105 {offsets = [0, 0], sizes = [8, 32], strides = [1, 1]} : vector<8x96xf32> to vector<8x32xf32>
    %107 = vector.extract_strided_slice %105 {offsets = [0, 32], sizes = [8, 32], strides = [1, 1]} : vector<8x96xf32> to vector<8x32xf32>
    %108 = vector.extract_strided_slice %105 {offsets = [0, 64], sizes = [8, 32], strides = [1, 1]} : vector<8x96xf32> to vector<8x32xf32>
    %109 = vector.extract_strided_slice %99 {offsets = [0, 96], sizes = [8, 32], strides = [1, 1]} : vector<8x128xf32> to vector<8x32xf32>
    %110 = math.tanh %109 : vector<8x32xf32>
    %111 = arith.mulf %107, %94 : vector<8x32xf32>
    %112 = arith.mulf %106, %110 : vector<8x32xf32>
    %113 = arith.addf %111, %112 : vector<8x32xf32>
    %114 = math.tanh %113 : vector<8x32xf32>
    %115 = arith.mulf %108, %114 : vector<8x32xf32>
    %116 = vector.extract_strided_slice %6 {offsets = [48, 0], sizes = [8, 128], strides = [1, 1]} : vector<64x128xf32> to vector<8x128xf32>
    %cst_18 = arith.constant dense<0.000000e+00> : vector<8x128xf32>
    %117 = tpu.matmul %115, %2, %cst_18 {dimension_numbers = #tpu.dot_dimension_numbers<[1], [0], [0], [1], [0, 0, 1, 1], [], []>} : vector<8x32xf32>, vector<32x128xf32>, vector<8x128xf32> -> vector<8x128xf32>
    %118 = arith.addf %116, %117 : vector<8x128xf32>
    %119 = vector.extract_strided_slice %118 {offsets = [0, 0], sizes = [8, 96], strides = [1, 1]} : vector<8x128xf32> to vector<8x96xf32>
    %120 = arith.negf %119 : vector<8x96xf32>
    %121 = math.exp %120 : vector<8x96xf32>
    %cst_19 = arith.constant 1.000000e+00 : f32
    %122 = vector.broadcast %cst_19 : f32 to vector<8x96xf32>
    %123 = arith.addf %122, %121 : vector<8x96xf32>
    %124 = arith.divf %122, %123 : vector<8x96xf32>
    %125 = vector.extract_strided_slice %124 {offsets = [0, 0], sizes = [8, 32], strides = [1, 1]} : vector<8x96xf32> to vector<8x32xf32>
    %126 = vector.extract_strided_slice %124 {offsets = [0, 32], sizes = [8, 32], strides = [1, 1]} : vector<8x96xf32> to vector<8x32xf32>
    %127 = vector.extract_strided_slice %124 {offsets = [0, 64], sizes = [8, 32], strides = [1, 1]} : vector<8x96xf32> to vector<8x32xf32>
    %128 = vector.extract_strided_slice %118 {offsets = [0, 96], sizes = [8, 32], strides = [1, 1]} : vector<8x128xf32> to vector<8x32xf32>
    %129 = math.tanh %128 : vector<8x32xf32>
    %130 = arith.mulf %126, %113 : vector<8x32xf32>
    %131 = arith.mulf %125, %129 : vector<8x32xf32>
    %132 = arith.addf %130, %131 : vector<8x32xf32>
    %133 = math.tanh %132 : vector<8x32xf32>
    %134 = arith.mulf %127, %133 : vector<8x32xf32>
    %135 = vector.extract_strided_slice %6 {offsets = [56, 0], sizes = [8, 128], strides = [1, 1]} : vector<64x128xf32> to vector<8x128xf32>
    %cst_20 = arith.constant dense<0.000000e+00> : vector<8x128xf32>
    %136 = tpu.matmul %134, %2, %cst_20 {dimension_numbers = #tpu.dot_dimension_numbers<[1], [0], [0], [1], [0, 0, 1, 1], [], []>} : vector<8x32xf32>, vector<32x128xf32>, vector<8x128xf32> -> vector<8x128xf32>
    %137 = arith.addf %135, %136 : vector<8x128xf32>
    %138 = vector.extract_strided_slice %137 {offsets = [0, 0], sizes = [8, 96], strides = [1, 1]} : vector<8x128xf32> to vector<8x96xf32>
    %139 = arith.negf %138 : vector<8x96xf32>
    %140 = math.exp %139 : vector<8x96xf32>
    %cst_21 = arith.constant 1.000000e+00 : f32
    %141 = vector.broadcast %cst_21 : f32 to vector<8x96xf32>
    %142 = arith.addf %141, %140 : vector<8x96xf32>
    %143 = arith.divf %141, %142 : vector<8x96xf32>
    %144 = vector.extract_strided_slice %143 {offsets = [0, 0], sizes = [8, 32], strides = [1, 1]} : vector<8x96xf32> to vector<8x32xf32>
    %145 = vector.extract_strided_slice %143 {offsets = [0, 32], sizes = [8, 32], strides = [1, 1]} : vector<8x96xf32> to vector<8x32xf32>
    %146 = vector.extract_strided_slice %143 {offsets = [0, 64], sizes = [8, 32], strides = [1, 1]} : vector<8x96xf32> to vector<8x32xf32>
    %147 = vector.extract_strided_slice %137 {offsets = [0, 96], sizes = [8, 32], strides = [1, 1]} : vector<8x128xf32> to vector<8x32xf32>
    %148 = math.tanh %147 : vector<8x32xf32>
    %149 = arith.mulf %145, %132 : vector<8x32xf32>
    %150 = arith.mulf %144, %148 : vector<8x32xf32>
    %151 = arith.addf %149, %150 : vector<8x32xf32>
    %152 = math.tanh %151 : vector<8x32xf32>
    %153 = arith.mulf %146, %152 : vector<8x32xf32>
    %154 = tpu.concatenate %20, %39, %58, %77, %96, %115, %134, %153 in 0 : vector<8x32xf32>, vector<8x32xf32>, vector<8x32xf32>, vector<8x32xf32>, vector<8x32xf32>, vector<8x32xf32>, vector<8x32xf32>, vector<8x32xf32> -> vector<64x32xf32>
    %c0_22 = arith.constant 0 : index
    %c0_23 = arith.constant 0 : index
    %155 = vector.load %arg4[%c0_22, %c0_23] : memref<32x128xf32, #tpu.memory_space<vmem>>, vector<32x128xf32>
    %c0_24 = arith.constant 0 : index
    %c0_25 = arith.constant 0 : index
    %156 = vector.load %arg5[%c0_24, %c0_25] : memref<32x128xf32, #tpu.memory_space<vmem>>, vector<32x128xf32>
    %c0_26 = arith.constant 0 : index
    %c0_27 = arith.constant 0 : index
    %157 = vector.load %arg6[%c0_26, %c0_27] : memref<1x128xf32, #tpu.memory_space<vmem>>, vector<1x128xf32>
    %cst_28 = arith.constant dense<0.000000e+00> : vector<64x128xf32>
    %158 = tpu.matmul %154, %155, %cst_28 {dimension_numbers = #tpu.dot_dimension_numbers<[1], [0], [0], [1], [0, 0, 1, 1], [], []>} : vector<64x32xf32>, vector<32x128xf32>, vector<64x128xf32> -> vector<64x128xf32>
    %159 = vector.broadcast %157 : vector<1x128xf32> to vector<64x128xf32>
    %160 = arith.addf %158, %159 : vector<64x128xf32>
    %161 = vector.extract_strided_slice %160 {offsets = [0, 0], sizes = [8, 128], strides = [1, 1]} : vector<64x128xf32> to vector<8x128xf32>
    %162 = vector.extract_strided_slice %161 {offsets = [0, 0], sizes = [8, 96], strides = [1, 1]} : vector<8x128xf32> to vector<8x96xf32>
    %163 = arith.negf %162 : vector<8x96xf32>
    %164 = math.exp %163 : vector<8x96xf32>
    %cst_29 = arith.constant 1.000000e+00 : f32
    %165 = vector.broadcast %cst_29 : f32 to vector<8x96xf32>
    %166 = arith.addf %165, %164 : vector<8x96xf32>
    %167 = arith.divf %165, %166 : vector<8x96xf32>
    %168 = vector.extract_strided_slice %167 {offsets = [0, 0], sizes = [8, 32], strides = [1, 1]} : vector<8x96xf32> to vector<8x32xf32>
    %169 = vector.extract_strided_slice %167 {offsets = [0, 64], sizes = [8, 32], strides = [1, 1]} : vector<8x96xf32> to vector<8x32xf32>
    %170 = vector.extract_strided_slice %161 {offsets = [0, 96], sizes = [8, 32], strides = [1, 1]} : vector<8x128xf32> to vector<8x32xf32>
    %171 = math.tanh %170 : vector<8x32xf32>
    %172 = arith.mulf %168, %171 : vector<8x32xf32>
    %173 = math.tanh %172 : vector<8x32xf32>
    %174 = arith.mulf %169, %173 : vector<8x32xf32>
    %175 = vector.extract_strided_slice %160 {offsets = [8, 0], sizes = [8, 128], strides = [1, 1]} : vector<64x128xf32> to vector<8x128xf32>
    %cst_30 = arith.constant dense<0.000000e+00> : vector<8x128xf32>
    %176 = tpu.matmul %174, %156, %cst_30 {dimension_numbers = #tpu.dot_dimension_numbers<[1], [0], [0], [1], [0, 0, 1, 1], [], []>} : vector<8x32xf32>, vector<32x128xf32>, vector<8x128xf32> -> vector<8x128xf32>
    %177 = arith.addf %175, %176 : vector<8x128xf32>
    %178 = vector.extract_strided_slice %177 {offsets = [0, 0], sizes = [8, 96], strides = [1, 1]} : vector<8x128xf32> to vector<8x96xf32>
    %179 = arith.negf %178 : vector<8x96xf32>
    %180 = math.exp %179 : vector<8x96xf32>
    %cst_31 = arith.constant 1.000000e+00 : f32
    %181 = vector.broadcast %cst_31 : f32 to vector<8x96xf32>
    %182 = arith.addf %181, %180 : vector<8x96xf32>
    %183 = arith.divf %181, %182 : vector<8x96xf32>
    %184 = vector.extract_strided_slice %183 {offsets = [0, 0], sizes = [8, 32], strides = [1, 1]} : vector<8x96xf32> to vector<8x32xf32>
    %185 = vector.extract_strided_slice %183 {offsets = [0, 32], sizes = [8, 32], strides = [1, 1]} : vector<8x96xf32> to vector<8x32xf32>
    %186 = vector.extract_strided_slice %183 {offsets = [0, 64], sizes = [8, 32], strides = [1, 1]} : vector<8x96xf32> to vector<8x32xf32>
    %187 = vector.extract_strided_slice %177 {offsets = [0, 96], sizes = [8, 32], strides = [1, 1]} : vector<8x128xf32> to vector<8x32xf32>
    %188 = math.tanh %187 : vector<8x32xf32>
    %189 = arith.mulf %185, %172 : vector<8x32xf32>
    %190 = arith.mulf %184, %188 : vector<8x32xf32>
    %191 = arith.addf %189, %190 : vector<8x32xf32>
    %192 = math.tanh %191 : vector<8x32xf32>
    %193 = arith.mulf %186, %192 : vector<8x32xf32>
    %194 = vector.extract_strided_slice %160 {offsets = [16, 0], sizes = [8, 128], strides = [1, 1]} : vector<64x128xf32> to vector<8x128xf32>
    %cst_32 = arith.constant dense<0.000000e+00> : vector<8x128xf32>
    %195 = tpu.matmul %193, %156, %cst_32 {dimension_numbers = #tpu.dot_dimension_numbers<[1], [0], [0], [1], [0, 0, 1, 1], [], []>} : vector<8x32xf32>, vector<32x128xf32>, vector<8x128xf32> -> vector<8x128xf32>
    %196 = arith.addf %194, %195 : vector<8x128xf32>
    %197 = vector.extract_strided_slice %196 {offsets = [0, 0], sizes = [8, 96], strides = [1, 1]} : vector<8x128xf32> to vector<8x96xf32>
    %198 = arith.negf %197 : vector<8x96xf32>
    %199 = math.exp %198 : vector<8x96xf32>
    %cst_33 = arith.constant 1.000000e+00 : f32
    %200 = vector.broadcast %cst_33 : f32 to vector<8x96xf32>
    %201 = arith.addf %200, %199 : vector<8x96xf32>
    %202 = arith.divf %200, %201 : vector<8x96xf32>
    %203 = vector.extract_strided_slice %202 {offsets = [0, 0], sizes = [8, 32], strides = [1, 1]} : vector<8x96xf32> to vector<8x32xf32>
    %204 = vector.extract_strided_slice %202 {offsets = [0, 32], sizes = [8, 32], strides = [1, 1]} : vector<8x96xf32> to vector<8x32xf32>
    %205 = vector.extract_strided_slice %202 {offsets = [0, 64], sizes = [8, 32], strides = [1, 1]} : vector<8x96xf32> to vector<8x32xf32>
    %206 = vector.extract_strided_slice %196 {offsets = [0, 96], sizes = [8, 32], strides = [1, 1]} : vector<8x128xf32> to vector<8x32xf32>
    %207 = math.tanh %206 : vector<8x32xf32>
    %208 = arith.mulf %204, %191 : vector<8x32xf32>
    %209 = arith.mulf %203, %207 : vector<8x32xf32>
    %210 = arith.addf %208, %209 : vector<8x32xf32>
    %211 = math.tanh %210 : vector<8x32xf32>
    %212 = arith.mulf %205, %211 : vector<8x32xf32>
    %213 = vector.extract_strided_slice %160 {offsets = [24, 0], sizes = [8, 128], strides = [1, 1]} : vector<64x128xf32> to vector<8x128xf32>
    %cst_34 = arith.constant dense<0.000000e+00> : vector<8x128xf32>
    %214 = tpu.matmul %212, %156, %cst_34 {dimension_numbers = #tpu.dot_dimension_numbers<[1], [0], [0], [1], [0, 0, 1, 1], [], []>} : vector<8x32xf32>, vector<32x128xf32>, vector<8x128xf32> -> vector<8x128xf32>
    %215 = arith.addf %213, %214 : vector<8x128xf32>
    %216 = vector.extract_strided_slice %215 {offsets = [0, 0], sizes = [8, 96], strides = [1, 1]} : vector<8x128xf32> to vector<8x96xf32>
    %217 = arith.negf %216 : vector<8x96xf32>
    %218 = math.exp %217 : vector<8x96xf32>
    %cst_35 = arith.constant 1.000000e+00 : f32
    %219 = vector.broadcast %cst_35 : f32 to vector<8x96xf32>
    %220 = arith.addf %219, %218 : vector<8x96xf32>
    %221 = arith.divf %219, %220 : vector<8x96xf32>
    %222 = vector.extract_strided_slice %221 {offsets = [0, 0], sizes = [8, 32], strides = [1, 1]} : vector<8x96xf32> to vector<8x32xf32>
    %223 = vector.extract_strided_slice %221 {offsets = [0, 32], sizes = [8, 32], strides = [1, 1]} : vector<8x96xf32> to vector<8x32xf32>
    %224 = vector.extract_strided_slice %221 {offsets = [0, 64], sizes = [8, 32], strides = [1, 1]} : vector<8x96xf32> to vector<8x32xf32>
    %225 = vector.extract_strided_slice %215 {offsets = [0, 96], sizes = [8, 32], strides = [1, 1]} : vector<8x128xf32> to vector<8x32xf32>
    %226 = math.tanh %225 : vector<8x32xf32>
    %227 = arith.mulf %223, %210 : vector<8x32xf32>
    %228 = arith.mulf %222, %226 : vector<8x32xf32>
    %229 = arith.addf %227, %228 : vector<8x32xf32>
    %230 = math.tanh %229 : vector<8x32xf32>
    %231 = arith.mulf %224, %230 : vector<8x32xf32>
    %232 = vector.extract_strided_slice %160 {offsets = [32, 0], sizes = [8, 128], strides = [1, 1]} : vector<64x128xf32> to vector<8x128xf32>
    %cst_36 = arith.constant dense<0.000000e+00> : vector<8x128xf32>
    %233 = tpu.matmul %231, %156, %cst_36 {dimension_numbers = #tpu.dot_dimension_numbers<[1], [0], [0], [1], [0, 0, 1, 1], [], []>} : vector<8x32xf32>, vector<32x128xf32>, vector<8x128xf32> -> vector<8x128xf32>
    %234 = arith.addf %232, %233 : vector<8x128xf32>
    %235 = vector.extract_strided_slice %234 {offsets = [0, 0], sizes = [8, 96], strides = [1, 1]} : vector<8x128xf32> to vector<8x96xf32>
    %236 = arith.negf %235 : vector<8x96xf32>
    %237 = math.exp %236 : vector<8x96xf32>
    %cst_37 = arith.constant 1.000000e+00 : f32
    %238 = vector.broadcast %cst_37 : f32 to vector<8x96xf32>
    %239 = arith.addf %238, %237 : vector<8x96xf32>
    %240 = arith.divf %238, %239 : vector<8x96xf32>
    %241 = vector.extract_strided_slice %240 {offsets = [0, 0], sizes = [8, 32], strides = [1, 1]} : vector<8x96xf32> to vector<8x32xf32>
    %242 = vector.extract_strided_slice %240 {offsets = [0, 32], sizes = [8, 32], strides = [1, 1]} : vector<8x96xf32> to vector<8x32xf32>
    %243 = vector.extract_strided_slice %240 {offsets = [0, 64], sizes = [8, 32], strides = [1, 1]} : vector<8x96xf32> to vector<8x32xf32>
    %244 = vector.extract_strided_slice %234 {offsets = [0, 96], sizes = [8, 32], strides = [1, 1]} : vector<8x128xf32> to vector<8x32xf32>
    %245 = math.tanh %244 : vector<8x32xf32>
    %246 = arith.mulf %242, %229 : vector<8x32xf32>
    %247 = arith.mulf %241, %245 : vector<8x32xf32>
    %248 = arith.addf %246, %247 : vector<8x32xf32>
    %249 = math.tanh %248 : vector<8x32xf32>
    %250 = arith.mulf %243, %249 : vector<8x32xf32>
    %251 = vector.extract_strided_slice %160 {offsets = [40, 0], sizes = [8, 128], strides = [1, 1]} : vector<64x128xf32> to vector<8x128xf32>
    %cst_38 = arith.constant dense<0.000000e+00> : vector<8x128xf32>
    %252 = tpu.matmul %250, %156, %cst_38 {dimension_numbers = #tpu.dot_dimension_numbers<[1], [0], [0], [1], [0, 0, 1, 1], [], []>} : vector<8x32xf32>, vector<32x128xf32>, vector<8x128xf32> -> vector<8x128xf32>
    %253 = arith.addf %251, %252 : vector<8x128xf32>
    %254 = vector.extract_strided_slice %253 {offsets = [0, 0], sizes = [8, 96], strides = [1, 1]} : vector<8x128xf32> to vector<8x96xf32>
    %255 = arith.negf %254 : vector<8x96xf32>
    %256 = math.exp %255 : vector<8x96xf32>
    %cst_39 = arith.constant 1.000000e+00 : f32
    %257 = vector.broadcast %cst_39 : f32 to vector<8x96xf32>
    %258 = arith.addf %257, %256 : vector<8x96xf32>
    %259 = arith.divf %257, %258 : vector<8x96xf32>
    %260 = vector.extract_strided_slice %259 {offsets = [0, 0], sizes = [8, 32], strides = [1, 1]} : vector<8x96xf32> to vector<8x32xf32>
    %261 = vector.extract_strided_slice %259 {offsets = [0, 32], sizes = [8, 32], strides = [1, 1]} : vector<8x96xf32> to vector<8x32xf32>
    %262 = vector.extract_strided_slice %259 {offsets = [0, 64], sizes = [8, 32], strides = [1, 1]} : vector<8x96xf32> to vector<8x32xf32>
    %263 = vector.extract_strided_slice %253 {offsets = [0, 96], sizes = [8, 32], strides = [1, 1]} : vector<8x128xf32> to vector<8x32xf32>
    %264 = math.tanh %263 : vector<8x32xf32>
    %265 = arith.mulf %261, %248 : vector<8x32xf32>
    %266 = arith.mulf %260, %264 : vector<8x32xf32>
    %267 = arith.addf %265, %266 : vector<8x32xf32>
    %268 = math.tanh %267 : vector<8x32xf32>
    %269 = arith.mulf %262, %268 : vector<8x32xf32>
    %270 = vector.extract_strided_slice %160 {offsets = [48, 0], sizes = [8, 128], strides = [1, 1]} : vector<64x128xf32> to vector<8x128xf32>
    %cst_40 = arith.constant dense<0.000000e+00> : vector<8x128xf32>
    %271 = tpu.matmul %269, %156, %cst_40 {dimension_numbers = #tpu.dot_dimension_numbers<[1], [0], [0], [1], [0, 0, 1, 1], [], []>} : vector<8x32xf32>, vector<32x128xf32>, vector<8x128xf32> -> vector<8x128xf32>
    %272 = arith.addf %270, %271 : vector<8x128xf32>
    %273 = vector.extract_strided_slice %272 {offsets = [0, 0], sizes = [8, 96], strides = [1, 1]} : vector<8x128xf32> to vector<8x96xf32>
    %274 = arith.negf %273 : vector<8x96xf32>
    %275 = math.exp %274 : vector<8x96xf32>
    %cst_41 = arith.constant 1.000000e+00 : f32
    %276 = vector.broadcast %cst_41 : f32 to vector<8x96xf32>
    %277 = arith.addf %276, %275 : vector<8x96xf32>
    %278 = arith.divf %276, %277 : vector<8x96xf32>
    %279 = vector.extract_strided_slice %278 {offsets = [0, 0], sizes = [8, 32], strides = [1, 1]} : vector<8x96xf32> to vector<8x32xf32>
    %280 = vector.extract_strided_slice %278 {offsets = [0, 32], sizes = [8, 32], strides = [1, 1]} : vector<8x96xf32> to vector<8x32xf32>
    %281 = vector.extract_strided_slice %278 {offsets = [0, 64], sizes = [8, 32], strides = [1, 1]} : vector<8x96xf32> to vector<8x32xf32>
    %282 = vector.extract_strided_slice %272 {offsets = [0, 96], sizes = [8, 32], strides = [1, 1]} : vector<8x128xf32> to vector<8x32xf32>
    %283 = math.tanh %282 : vector<8x32xf32>
    %284 = arith.mulf %280, %267 : vector<8x32xf32>
    %285 = arith.mulf %279, %283 : vector<8x32xf32>
    %286 = arith.addf %284, %285 : vector<8x32xf32>
    %287 = math.tanh %286 : vector<8x32xf32>
    %288 = arith.mulf %281, %287 : vector<8x32xf32>
    %289 = vector.extract_strided_slice %160 {offsets = [56, 0], sizes = [8, 128], strides = [1, 1]} : vector<64x128xf32> to vector<8x128xf32>
    %cst_42 = arith.constant dense<0.000000e+00> : vector<8x128xf32>
    %290 = tpu.matmul %288, %156, %cst_42 {dimension_numbers = #tpu.dot_dimension_numbers<[1], [0], [0], [1], [0, 0, 1, 1], [], []>} : vector<8x32xf32>, vector<32x128xf32>, vector<8x128xf32> -> vector<8x128xf32>
    %291 = arith.addf %289, %290 : vector<8x128xf32>
    %292 = vector.extract_strided_slice %291 {offsets = [0, 0], sizes = [8, 96], strides = [1, 1]} : vector<8x128xf32> to vector<8x96xf32>
    %293 = arith.negf %292 : vector<8x96xf32>
    %294 = math.exp %293 : vector<8x96xf32>
    %cst_43 = arith.constant 1.000000e+00 : f32
    %295 = vector.broadcast %cst_43 : f32 to vector<8x96xf32>
    %296 = arith.addf %295, %294 : vector<8x96xf32>
    %297 = arith.divf %295, %296 : vector<8x96xf32>
    %298 = vector.extract_strided_slice %297 {offsets = [0, 0], sizes = [8, 32], strides = [1, 1]} : vector<8x96xf32> to vector<8x32xf32>
    %299 = vector.extract_strided_slice %297 {offsets = [0, 32], sizes = [8, 32], strides = [1, 1]} : vector<8x96xf32> to vector<8x32xf32>
    %300 = vector.extract_strided_slice %297 {offsets = [0, 64], sizes = [8, 32], strides = [1, 1]} : vector<8x96xf32> to vector<8x32xf32>
    %301 = vector.extract_strided_slice %291 {offsets = [0, 96], sizes = [8, 32], strides = [1, 1]} : vector<8x128xf32> to vector<8x32xf32>
    %302 = math.tanh %301 : vector<8x32xf32>
    %303 = arith.mulf %299, %286 : vector<8x32xf32>
    %304 = arith.mulf %298, %302 : vector<8x32xf32>
    %305 = arith.addf %303, %304 : vector<8x32xf32>
    %306 = math.tanh %305 : vector<8x32xf32>
    %307 = arith.mulf %300, %306 : vector<8x32xf32>
    %c0_44 = arith.constant 0 : index
    %c0_45 = arith.constant 0 : index
    %308 = vector.load %arg7[%c0_44, %c0_45] : memref<32x128xf32, #tpu.memory_space<vmem>>, vector<32x128xf32>
    %cst_46 = arith.constant dense<0.000000e+00> : vector<8x128xf32>
    %309 = tpu.matmul %307, %308, %cst_46 {dimension_numbers = #tpu.dot_dimension_numbers<[1], [0], [0], [1], [0, 0, 1, 1], [], []>} : vector<8x32xf32>, vector<32x128xf32>, vector<8x128xf32> -> vector<8x128xf32>
    %c0_47 = arith.constant 0 : index
    %c0_48 = arith.constant 0 : index
    %310 = vector.load %arg8[%c0_47, %c0_48] : memref<1x128xf32, #tpu.memory_space<vmem>>, vector<1x128xf32>
    %311 = vector.broadcast %310 : vector<1x128xf32> to vector<8x128xf32>
    %312 = arith.addf %309, %311 : vector<8x128xf32>
    %c0_49 = arith.constant 0 : index
    %c0_50 = arith.constant 0 : index
    %313 = vector.load %arg9[%c0_49, %c0_50] : memref<8x128xf32, #tpu.memory_space<vmem>>, vector<8x128xf32>
    tpu.vector_store %arg9[%c0_49, %c0_50], %312 {strides = array<i32>} : memref<8x128xf32, #tpu.memory_space<vmem>>, vector<8x128xf32>,
    return
  }
}

</mosaic_0001>

<llo_original>
// kernel: tpu_custom_call.1
$region0: #{tpu_custom_call.1}
  #allocation0 [shape = 'u32[]', space=smem, size = 0x4, offset = 0x4, fixed_abs, tag = 'smem constant byte address 0x4 - core index']
  #allocation1 [shape = 'u32[144,128]{1,0:T(1,128)}', space=vmem, size = 0x12000, scoped, tag = 'internal scratch']
  %s0 = inlined_call_operand.vmem [shape: f32[64,16], index: 0, kind: input, shape index: {}]
  %s1 = inlined_call_operand.hbm [shape: f32[16,128], index: 1, kind: input, shape index: {}]
  %s2 = inlined_call_operand.vmem [shape: f32[32,128], index: 2, kind: input, shape index: {}]
  %s3 = inlined_call_operand.vmem [shape: f32[1,128], index: 3, kind: input, shape index: {}]
  %s4 = inlined_call_operand.vmem [shape: f32[32,128], index: 4, kind: input, shape index: {}]
  %s5 = inlined_call_operand.vmem [shape: f32[32,128], index: 5, kind: input, shape index: {}]
  %s6 = inlined_call_operand.vmem [shape: f32[1,128], index: 6, kind: input, shape index: {}]
  %s7 = inlined_call_operand.hbm [shape: f32[32,128], index: 7, kind: input, shape index: {}]
  %s8 = inlined_call_operand.vmem [shape: f32[1,128], index: 8, kind: input, shape index: {}]
  %s9 = inlined_call_operand.hbm [shape: f32[8,128], index: 9, kind: output, shape index: {}]
  %s10 = sld [smem:[#allocation0]]
  $region54: #{tpu_custom_call.1} parent=0
    _
  %s12 = ssub.s32 1, %s10
  %s13 = scalar_select 0, %s12, %s10
  $region1: #{tpu_custom_call.1} parent=0
    #allocation2 [shape = 'u8[8192]{0}', space=vmem, size = 0x2000, scoped, tag = 'input window, operand 1, single buffered']
    #allocation3 [shape = 's32[1]{0}', space=sflag, size = 0x4, scoped, tag = 'scoped memory for tpu_custom_call.1']
    #allocation4 [shape = 's32[1]{0}', space=sflag, size = 0x4, scoped, tag = 'scoped memory for tpu_custom_call.1']
    #allocation5 [shape = 'u8[16384]{0}', space=vmem, size = 0x4000, scoped, tag = 'input window, operand 7, single buffered']
    #allocation6 [shape = 's32[1]{0}', space=sflag, size = 0x4, scoped, tag = 'scoped memory for tpu_custom_call.1']
    #allocation7 [shape = 'u8[4096]{0}', space=vmem, size = 0x1000, scoped, tag = 'output window, operand 0, single buffered']
    %14 = vsyncpa [#allocation3], 0
    %15 = vsyncpa [#allocation6], 0
    %16 = vsyncpa [#allocation4], 0
    // Predicated region
    $region2: #{tpu_custom_call.1} parent=1 // pred_check
      _
    $region3: #{tpu_custom_call.1} parent=1 // pred_check_branch
      %18 = sbr.rel (0) target = $region5
    $region4: #{tpu_custom_call.1} parent=1 // pred_region
      _
    $region5: #{tpu_custom_call.1} parent=1 // pred_fallthru
      _
    // Predicated region
    $region6: #{tpu_custom_call.1} parent=1 // pred_check
      _
    $region7: #{tpu_custom_call.1} parent=1 // pred_check_branch
      %20 = sbr.rel (0) target = $region9
    $region8: #{tpu_custom_call.1} parent=1 // pred_region
      %s22 = ssub.s32 256, 256
      %23 = vsyncadd [#allocation3], %s22
      %s24 = sshll.u32 [#allocation2], 4
      %s25 = int_to_ptr.vmem [resolvable:$true] %s24
      %30 = dma.hbm_to_vmem [thread:$0]  %s1, 256, %s25, [#allocation3], 128, 128, 8
    $region9: #{tpu_custom_call.1} parent=1 // pred_fallthru
      _
    // Predicated region
    $region10: #{tpu_custom_call.1} parent=1 // pred_check
      _
    $region11: #{tpu_custom_call.1} parent=1 // pred_check_branch
      %32 = sbr.rel (0) target = $region13
    $region12: #{tpu_custom_call.1} parent=1 // pred_region
      _
    $region13: #{tpu_custom_call.1} parent=1 // pred_fallthru
      _
    // Predicated region
    $region14: #{tpu_custom_call.1} parent=1 // pred_check
      _
    $region15: #{tpu_custom_call.1} parent=1 // pred_check_branch
      %34 = sbr.rel (0) target = $region17
    $region16: #{tpu_custom_call.1} parent=1 // pred_region
      _
    $region17: #{tpu_custom_call.1} parent=1 // pred_fallthru
      _
    // Predicated region
    $region18: #{tpu_custom_call.1} parent=1 // pred_check
      _
    $region19: #{tpu_custom_call.1} parent=1 // pred_check_branch
      %36 = sbr.rel (0) target = $region21
    $region20: #{tpu_custom_call.1} parent=1 // pred_region
      _
    $region21: #{tpu_custom_call.1} parent=1 // pred_fallthru
      _
    // Predicated region
    $region22: #{tpu_custom_call.1} parent=1 // pred_check
      _
    $region23: #{tpu_custom_call.1} parent=1 // pred_check_branch
      %38 = sbr.rel (0) target = $region25
    $region24: #{tpu_custom_call.1} parent=1 // pred_region
      _
    $region25: #{tpu_custom_call.1} parent=1 // pred_fallthru
      _
    // Predicated region
    $region26: #{tpu_custom_call.1} parent=1 // pred_check
      _
    $region27: #{tpu_custom_call.1} parent=1 // pred_check_branch
      %40 = sbr.rel (0) target = $region29
    $region28: #{tpu_custom_call.1} parent=1 // pred_region
      _
    $region29: #{tpu_custom_call.1} parent=1 // pred_fallthru
      _
    // Predicated region
    $region30: #{tpu_custom_call.1} parent=1 // pred_check
      _
    $region31: #{tpu_custom_call.1} parent=1 // pred_check_branch
      %42 = sbr.rel (0) target = $region33
    $region32: #{tpu_custom_call.1} parent=1 // pred_region
      %s44 = ssub.s32 512, 512
      %45 = vsyncadd [#allocation6], %s44
      %s46 = sshll.u32 [#allocation5], 4
      %s47 = int_to_ptr.vmem [resolvable:$true] %s46
      %52 = dma.hbm_to_vmem [thread:$0]  %s7, 512, %s47, [#allocation6], 128, 128, 8
    $region33: #{tpu_custom_call.1} parent=1 // pred_fallthru
      _
    // Predicated region
    $region34: #{tpu_custom_call.1} parent=1 // pred_check
      _
    $region35: #{tpu_custom_call.1} parent=1 // pred_check_branch
      %54 = sbr.rel (0) target = $region37
    $region36: #{tpu_custom_call.1} parent=1 // pred_region
      _
    $region37: #{tpu_custom_call.1} parent=1 // pred_fallthru
      _
    // Predicated region
    $region38: #{tpu_custom_call.1} parent=1 // pred_check
      _
    $region39: #{tpu_custom_call.1} parent=1 // pred_check_branch
      %56 = sbr.rel (0) target = $region41
    $region40: #{tpu_custom_call.1} parent=1 // pred_region
      %57 = dma.done [#allocation3], 256
    $region41: #{tpu_custom_call.1} parent=1 // pred_fallthru
      _
    // Predicated region
    $region42: #{tpu_custom_call.1} parent=1 // pred_check
      _
    $region43: #{tpu_custom_call.1} parent=1 // pred_check_branch
      %59 = sbr.rel (0) target = $region45
    $region44: #{tpu_custom_call.1} parent=1 // pred_region
      %60 = dma.done [#allocation6], 512
    $region45: #{tpu_custom_call.1} parent=1 // pred_fallthru
      _
    %v61 = vld [vmem:[%s0] sm:$0xff]
    %v62 = vld [vmem:[%s0 + $0x8] sm:$0xff]
    %v63 = vld [vmem:[%s0 + $0x10] sm:$0xff]
    %v64 = vld [vmem:[%s0 + $0x18] sm:$0xff]
    %v65 = vld [vmem:[%s0 + $0x20] sm:$0xff]
    %v66 = vld [vmem:[%s0 + $0x28] sm:$0xff]
    %v67 = vld [vmem:[%s0 + $0x30] sm:$0xff]
    %v68 = vld [vmem:[%s0 + $0x38] sm:$0xff]
    %v69 = vld [vmem:[#allocation2] sm:$0xff]
    %v70 = vld [vmem:[#allocation2 + $0x8] sm:$0xff]
    %v71 = vld [vmem:[%s2] sm:$0xff]
    %v72 = vld [vmem:[%s2 + $0x8] sm:$0xff]
    %v73 = vld [vmem:[%s2 + $0x10] sm:$0xff]
    %v74 = vld [vmem:[%s2 + $0x18] sm:$0xff]
    %v75 = vld [vmem:[%s3] sm:$0x1]
    %v77 = vlaneseq
    %v78 = vshrl.u32 %v77, 7
    %v79 = vsub.s32 0, %v78
    %v80 = vrot.slane %v75, %v79
    %vm82 = vcmask 130048
    %v84 = vsel %vm82, %v61, 0
    %v87 = vsel %vm82, %v62, 0
    %v90 = vsel %vm82, %v63, 0
    %v93 = vsel %vm82, %v64, 0
    %v96 = vsel %vm82, %v65, 0
    %v99 = vsel %vm82, %v66, 0
    %v102 = vsel %vm82, %v67, 0
    %v105 = vsel %vm82, %v68, 0
    %107 = vmatprep.subr.mxu0 0.0
    %108 = vmatpush1.msra.mxu0 %v69
    %109 = vmatprep.subr.mxu0 0.0
    %110 = vmatpush1.msra.mxu0 %v70
    %111 = vmatprep.subr.mxu0 0.0
    %112 = vmatpush1.msra.mxu0 0.0
    %113 = vmatprep.subr.mxu0 0.0
    %114 = vmatpush1.msra.mxu0 0.0
    %115 = vmatprep.subr.mxu0 0.0
    %116 = vmatpush1.msra.mxu0 0.0
    %117 = vmatprep.subr.mxu0 0.0
    %118 = vmatpush1.msra.mxu0 0.0
    %119 = vmatprep.subr.mxu0 0.0
    %120 = vmatpush1.msra.mxu0 0.0
    %121 = vmatprep.subr.mxu0 0.0
    %122 = vmatpush1.msra.mxu0 0.0
    %123 = vmatprep.subr.mxu0 0.0
    %124 = vmatpush1.msra.mxu0 0.0
    %125 = vmatprep.subr.mxu0 0.0
    %126 = vmatpush1.msra.mxu0 0.0
    %127 = vmatprep.subr.mxu0 0.0
    %128 = vmatpush1.msra.mxu0 0.0
    %129 = vmatprep.subr.mxu0 0.0
    %130 = vmatpush1.msra.mxu0 0.0
    %131 = vmatprep.subr.mxu0 0.0
    %132 = vmatpush1.msra.mxu0 0.0
    %133 = vmatprep.subr.mxu0 0.0
    %134 = vmatpush1.msra.mxu0 0.0
    %135 = vmatprep.subr.mxu0 0.0
    %136 = vmatpush1.msra.mxu0 0.0
    %137 = vmatprep.subr.mxu0 0.0
    %138 = vmatpush1.msra.mxu0 0.0
    %139 = vmatprep.subr.mxu0 0.0
    %140 = vmatpush1.msra.mxu0 0.0
    %141 = vmatprep.subr.mxu0 0.0
    %142 = vmatpush1.msra.mxu0 0.0
    %143 = vmatprep.subr.mxu0 0.0
    %144 = vmatpush1.msra.mxu0 0.0
    %145 = vmatprep.subr.mxu0 0.0
    %146 = vmatpush1.msra.mxu0 0.0
    %147 = vmatprep.subr.mxu0 0.0
    %148 = vmatpush1.msra.mxu0 0.0
    %149 = vmatprep.subr.mxu0 0.0
    %150 = vmatpush1.msra.mxu0 0.0
    %151 = vmatprep.subr.mxu0 0.0
    %152 = vmatpush1.msra.mxu0 0.0
    %153 = vmatprep.subr.mxu0 0.0
    %154 = vmatpush1.msra.mxu0 0.0
    %155 = vmatprep.subr.mxu0 0.0
    %156 = vmatpush1.msra.mxu0 0.0
    %157 = vmatprep.subr.mxu0 0.0
    %158 = vmatpush1.msra.mxu0 0.0
    %159 = vmatprep.subr.mxu0 0.0
    %160 = vmatpush1.msra.mxu0 0.0
    %161 = vmatprep.subr.mxu0 0.0
    %162 = vmatpush1.msra.mxu0 0.0
    %163 = vmatprep.subr.mxu0 0.0
    %164 = vmatpush1.msra.mxu0 0.0
    %165 = vmatprep.subr.mxu0 0.0
    %166 = vmatpush1.msra.mxu0 0.0
    %167 = vmatprep.subr.mxu0 0.0
    %168 = vmatpush1.msra.mxu0 0.0
    %169 = vmatprep.subr.mxu0 0.0
    %170 = vmatpush1.msra.mxu0 0.0
    %171 = vmatprep.mubr.f32.mxu0 0.0
    %172 = vmatmul.mubr.f32.gmra.mrb[0].mxu0 %v84
    %v173 = vpop.f32.mrb[0].mxu0
    %v174 = vadd.f32 %v80, %v173
    %v175 = vpop.f32.mrb[0].mxu0
    %176 = vmatprep.mubr.f32.mxu0 0.0
    %177 = vmatmul.mubr.f32.gmra.mrb[0].mxu0 %v87
    %v178 = vpop.f32.mrb[0].mxu0
    %v179 = vadd.f32 %v80, %v178
    %v180 = vpop.f32.mrb[0].mxu0
    %181 = vmatprep.mubr.f32.mxu0 0.0
    %182 = vmatmul.mubr.f32.gmra.mrb[0].mxu0 %v90
    %v183 = vpop.f32.mrb[0].mxu0
    %v184 = vadd.f32 %v80, %v183
    %v185 = vpop.f32.mrb[0].mxu0
    %186 = vmatprep.mubr.f32.mxu0 0.0
    %187 = vmatmul.mubr.f32.gmra.mrb[0].mxu0 %v93
    %v188 = vpop.f32.mrb[0].mxu0
    %v189 = vadd.f32 %v80, %v188
    %v190 = vpop.f32.mrb[0].mxu0
    %191 = vmatprep.mubr.f32.mxu0 0.0
    %192 = vmatmul.mubr.f32.gmra.mrb[0].mxu0 %v96
    %v193 = vpop.f32.mrb[0].mxu0
    %v194 = vadd.f32 %v80, %v193
    %v195 = vpop.f32.mrb[0].mxu0
    %196 = vmatprep.mubr.f32.mxu0 0.0
    %197 = vmatmul.mubr.f32.gmra.mrb[0].mxu0 %v99
    %v198 = vpop.f32.mrb[0].mxu0
    %v199 = vadd.f32 %v80, %v198
    %v200 = vpop.f32.mrb[0].mxu0
    %201 = vmatprep.mubr.f32.mxu0 0.0
    %202 = vmatmul.mubr.f32.gmra.mrb[0].mxu0 %v102
    %v203 = vpop.f32.mrb[0].mxu0
    %v204 = vadd.f32 %v80, %v203
    %v205 = vpop.f32.mrb[0].mxu0
    %206 = vmatprep.mubr.f32.mxu0 0.0
    %207 = vmatmul.mubr.f32.gmra.mrb[0].mxu0 %v105
    %v208 = vpop.f32.mrb[0].mxu0
    %v209 = vadd.f32 %v80, %v208
    %v210 = vpop.f32.mrb[0].mxu0
    %211 = vdwg.mxu0
    %v212 = vxor.u32 %v174, 2147483648
    %v213 = vmul.f32 %v212, 1.442695
    %v214 = vpow.pop %v213
    %v215 = vadd.f32 %v214, 1.0
    %v216 = vrcp.pop %v215
    %v217 = vmul.f32 1.0, %v216
    %v218 = vtanh.pop %v174
    %220 = vrot.lane.b32.xlu0 %v218, 32
    %v221 = vpop.permute.xlu0 %220
    %v223 = vmul.f32 %v217, %v221
    %v224 = vtanh.pop %v223
    %226 = vrot.lane.b32.xlu0 %v224, 64
    %v227 = vpop.permute.xlu0 %226
    %v229 = vmul.f32 %v217, %v227
    %231 = vrot.lane.b32.xlu0 %v229, 64
    %v232 = vpop.permute.xlu0 %231
    %vm233 = vcmask 261120
    %v234 = vsel %vm233, %v232, 0
    %236 = vmatprep.subr.mxu0 0.0
    %237 = vmatpush1.msra.mxu0 %v71
    %238 = vmatprep.subr.mxu0 0.0
    %239 = vmatpush1.msra.mxu0 %v72
    %240 = vmatprep.subr.mxu0 0.0
    %241 = vmatpush1.msra.mxu0 %v73
    %242 = vmatprep.subr.mxu0 0.0
    %243 = vmatpush1.msra.mxu0 %v74
    %244 = vmatprep.subr.mxu0 0.0
    %245 = vmatpush1.msra.mxu0 0.0
    %246 = vmatprep.subr.mxu0 0.0
    %247 = vmatpush1.msra.mxu0 0.0
    %248 = vmatprep.subr.mxu0 0.0
    %249 = vmatpush1.msra.mxu0 0.0
    %250 = vmatprep.subr.mxu0 0.0
    %251 = vmatpush1.msra.mxu0 0.0
    %252 = vmatprep.subr.mxu0 0.0
    %253 = vmatpush1.msra.mxu0 0.0
    %254 = vmatprep.subr.mxu0 0.0
    %255 = vmatpush1.msra.mxu0 0.0
    %256 = vmatprep.subr.mxu0 0.0
    %257 = vmatpush1.msra.mxu0 0.0
    %258 = vmatprep.subr.mxu0 0.0
    %259 = vmatpush1.msra.mxu0 0.0
    %260 = vmatprep.subr.mxu0 0.0
    %261 = vmatpush1.msra.mxu0 0.0
    %262 = vmatprep.subr.mxu0 0.0
    %263 = vmatpush1.msra.mxu0 0.0
    %264 = vmatprep.subr.mxu0 0.0
    %265 = vmatpush1.msra.mxu0 0.0
    %266 = vmatprep.subr.mxu0 0.0
    %267 = vmatpush1.msra.mxu0 0.0
    %268 = vmatprep.subr.mxu0 0.0
    %269 = vmatpush1.msra.mxu0 0.0
    %270 = vmatprep.subr.mxu0 0.0
    %271 = vmatpush1.msra.mxu0 0.0
    %272 = vmatprep.subr.mxu0 0.0
    %273 = vmatpush1.msra.mxu0 0.0
    %274 = vmatprep.subr.mxu0 0.0
    %275 = vmatpush1.msra.mxu0 0.0
    %276 = vmatprep.subr.mxu0 0.0
    %277 = vmatpush1.msra.mxu0 0.0
    %278 = vmatprep.subr.mxu0 0.0
    %279 = vmatpush1.msra.mxu0 0.0
    %280 = vmatprep.subr.mxu0 0.0
    %281 = vmatpush1.msra.mxu0 0.0
    %282 = vmatprep.subr.mxu0 0.0
    %283 = vmatpush1.msra.mxu0 0.0
    %284 = vmatprep.subr.mxu0 0.0
    %285 = vmatpush1.msra.mxu0 0.0
    %286 = vmatprep.subr.mxu0 0.0
    %287 = vmatpush1.msra.mxu0 0.0
    %288 = vmatprep.subr.mxu0 0.0
    %289 = vmatpush1.msra.mxu0 0.0
    %290 = vmatprep.subr.mxu0 0.0
    %291 = vmatpush1.msra.mxu0 0.0
    %292 = vmatprep.subr.mxu0 0.0
    %293 = vmatpush1.msra.mxu0 0.0
    %294 = vmatprep.subr.mxu0 0.0
    %295 = vmatpush1.msra.mxu0 0.0
    %296 = vmatprep.subr.mxu0 0.0
    %297 = vmatpush1.msra.mxu0 0.0
    %298 = vmatprep.subr.mxu0 0.0
    %299 = vmatpush1.msra.mxu0 0.0
    %300 = vmatprep.mubr.f32.mxu0 0.0
    %301 = vmatmul.mubr.f32.gmra.mrb[0].mxu0 %v234
    %v302 = vpop.f32.mrb[0].mxu0
    %v303 = vadd.f32 0.0, %v302
    %v304 = vpop.f32.mrb[0].mxu0
    %305 = vdwg.mxu0
    %v306 = vadd.f32 %v179, %v303
    %v307 = vxor.u32 %v306, 2147483648
    %v308 = vmul.f32 %v307, 1.442695
    %v309 = vpow.pop %v308
    %v310 = vadd.f32 %v309, 1.0
    %v311 = vrcp.pop %v310
    %v312 = vmul.f32 1.0, %v311
    %v313 = vtanh.pop %v306
    %315 = vrot.lane.b32.xlu0 %v223, 32
    %v316 = vpop.permute.xlu0 %315
    %v318 = vmul.f32 %v312, %v316
    %320 = vrot.lane.b32.xlu0 %v313, 32
    %v321 = vpop.permute.xlu0 %320
    %v323 = vmul.f32 %v312, %v321
    %325 = vrot.lane.b32.xlu0 %v323, 32
    %v326 = vpop.permute.xlu0 %325
    %v328 = vadd.f32 %v318, %v326
    %v329 = vtanh.pop %v328
    %331 = vrot.lane.b32.xlu0 %v329, 32
    %v332 = vpop.permute.xlu0 %331
    %v334 = vmul.f32 %v312, %v332
    %336 = vrot.lane.b32.xlu0 %v334, 64
    %v337 = vpop.permute.xlu0 %336
    %v338 = vsel %vm233, %v337, 0
    %340 = vmatprep.subr.mxu0 0.0
    %341 = vmatpush1.msra.mxu0 %v71
    %342 = vmatprep.subr.mxu0 0.0
    %343 = vmatpush1.msra.mxu0 %v72
    %344 = vmatprep.subr.mxu0 0.0
    %345 = vmatpush1.msra.mxu0 %v73
    %346 = vmatprep.subr.mxu0 0.0
    %347 = vmatpush1.msra.mxu0 %v74
    %348 = vmatprep.subr.mxu0 0.0
    %349 = vmatpush1.msra.mxu0 0.0
    %350 = vmatprep.subr.mxu0 0.0
    %351 = vmatpush1.msra.mxu0 0.0
    %352 = vmatprep.subr.mxu0 0.0
    %353 = vmatpush1.msra.mxu0 0.0
    %354 = vmatprep.subr.mxu0 0.0
    %355 = vmatpush1.msra.mxu0 0.0
    %356 = vmatprep.subr.mxu0 0.0
    %357 = vmatpush1.msra.mxu0 0.0
    %358 = vmatprep.subr.mxu0 0.0
    %359 = vmatpush1.msra.mxu0 0.0
    %360 = vmatprep.subr.mxu0 0.0
    %361 = vmatpush1.msra.mxu0 0.0
    %362 = vmatprep.subr.mxu0 0.0
    %363 = vmatpush1.msra.mxu0 0.0
    %364 = vmatprep.subr.mxu0 0.0
    %365 = vmatpush1.msra.mxu0 0.0
    %366 = vmatprep.subr.mxu0 0.0
    %367 = vmatpush1.msra.mxu0 0.0
    %368 = vmatprep.subr.mxu0 0.0
    %369 = vmatpush1.msra.mxu0 0.0
    %370 = vmatprep.subr.mxu0 0.0
    %371 = vmatpush1.msra.mxu0 0.0
    %372 = vmatprep.subr.mxu0 0.0
    %373 = vmatpush1.msra.mxu0 0.0
    %374 = vmatprep.subr.mxu0 0.0
    %375 = vmatpush1.msra.mxu0 0.0
    %376 = vmatprep.subr.mxu0 0.0
    %377 = vmatpush1.msra.mxu0 0.0
    %378 = vmatprep.subr.mxu0 0.0
    %379 = vmatpush1.msra.mxu0 0.0
    %380 = vmatprep.subr.mxu0 0.0
    %381 = vmatpush1.msra.mxu0 0.0
    %382 = vmatprep.subr.mxu0 0.0
    %383 = vmatpush1.msra.mxu0 0.0
    %384 = vmatprep.subr.mxu0 0.0
    %385 = vmatpush1.msra.mxu0 0.0
    %386 = vmatprep.subr.mxu0 0.0
    %387 = vmatpush1.msra.mxu0 0.0
    %388 = vmatprep.subr.mxu0 0.0
    %389 = vmatpush1.msra.mxu0 0.0
    %390 = vmatprep.subr.mxu0 0.0
    %391 = vmatpush1.msra.mxu0 0.0
    %392 = vmatprep.subr.mxu0 0.0
    %393 = vmatpush1.msra.mxu0 0.0
    %394 = vmatprep.subr.mxu0 0.0
    %395 = vmatpush1.msra.mxu0 0.0
    %396 = vmatprep.subr.mxu0 0.0
    %397 = vmatpush1.msra.mxu0 0.0
    %398 = vmatprep.subr.mxu0 0.0
    %399 = vmatpush1.msra.mxu0 0.0
    %400 = vmatprep.subr.mxu0 0.0
    %401 = vmatpush1.msra.mxu0 0.0
    %402 = vmatprep.subr.mxu0 0.0
    %403 = vmatpush1.msra.mxu0 0.0
    %404 = vmatprep.mubr.f32.mxu0 0.0
    %405 = vmatmul.mubr.f32.gmra.mrb[0].mxu0 %v338
    %v406 = vpop.f32.mrb[0].mxu0
    %v407 = vadd.f32 0.0, %v406
    %v408 = vpop.f32.mrb[0].mxu0
    %409 = vdwg.mxu0
    %v410 = vadd.f32 %v184, %v407
    %v411 = vxor.u32 %v410, 2147483648
    %v412 = vmul.f32 %v411, 1.442695
    %v413 = vpow.pop %v412
    %v414 = vadd.f32 %v413, 1.0
    %v415 = vrcp.pop %v414
    %v416 = vmul.f32 1.0, %v415
    %v417 = vtanh.pop %v410
    %v418 = vmul.f32 %v416, %v328
    %420 = vrot.lane.b32.xlu0 %v417, 32
    %v421 = vpop.permute.xlu0 %420
    %v423 = vmul.f32 %v416, %v421
    %425 = vrot.lane.b32.xlu0 %v423, 32
    %v426 = vpop.permute.xlu0 %425
    %v428 = vadd.f32 %v418, %v426
    %v429 = vtanh.pop %v428
    %431 = vrot.lane.b32.xlu0 %v429, 32
    %v432 = vpop.permute.xlu0 %431
    %v434 = vmul.f32 %v416, %v432
    %436 = vrot.lane.b32.xlu0 %v434, 64
    %v437 = vpop.permute.xlu0 %436
    %v438 = vsel %vm233, %v437, 0
    %440 = vmatprep.subr.mxu0 0.0
    %441 = vmatpush1.msra.mxu0 %v71
    %442 = vmatprep.subr.mxu0 0.0
    %443 = vmatpush1.msra.mxu0 %v72
    %444 = vmatprep.subr.mxu0 0.0
    %445 = vmatpush1.msra.mxu0 %v73
    %446 = vmatprep.subr.mxu0 0.0
    %447 = vmatpush1.msra.mxu0 %v74
    %448 = vmatprep.subr.mxu0 0.0
    %449 = vmatpush1.msra.mxu0 0.0
    %450 = vmatprep.subr.mxu0 0.0
    %451 = vmatpush1.msra.mxu0 0.0
    %452 = vmatprep.subr.mxu0 0.0
    %453 = vmatpush1.msra.mxu0 0.0
    %454 = vmatprep.subr.mxu0 0.0
    %455 = vmatpush1.msra.mxu0 0.0
    %456 = vmatprep.subr.mxu0 0.0
    %457 = vmatpush1.msra.mxu0 0.0
    %458 = vmatprep.subr.mxu0 0.0
    %459 = vmatpush1.msra.mxu0 0.0
    %460 = vmatprep.subr.mxu0 0.0
    %461 = vmatpush1.msra.mxu0 0.0
    %462 = vmatprep.subr.mxu0 0.0
    %463 = vmatpush1.msra.mxu0 0.0
    %464 = vmatprep.subr.mxu0 0.0
    %465 = vmatpush1.msra.mxu0 0.0
    %466 = vmatprep.subr.mxu0 0.0
    %467 = vmatpush1.msra.mxu0 0.0
    %468 = vmatprep.subr.mxu0 0.0
    %469 = vmatpush1.msra.mxu0 0.0
    %470 = vmatprep.subr.mxu0 0.0
    %471 = vmatpush1.msra.mxu0 0.0
    %472 = vmatprep.subr.mxu0 0.0
    %473 = vmatpush1.msra.mxu0 0.0
    %474 = vmatprep.subr.mxu0 0.0
    %475 = vmatpush1.msra.mxu0 0.0
    %476 = vmatprep.subr.mxu0 0.0
    %477 = vmatpush1.msra.mxu0 0.0
    %478 = vmatprep.subr.mxu0 0.0
    %479 = vmatpush1.msra.mxu0 0.0
    %480 = vmatprep.subr.mxu0 0.0
    %481 = vmatpush1.msra.mxu0 0.0
    %482 = vmatprep.subr.mxu0 0.0
    %483 = vmatpush1.msra.mxu0 0.0
    %484 = vmatprep.subr.mxu0 0.0
    %485 = vmatpush1.msra.mxu0 0.0
    %486 = vmatprep.subr.mxu0 0.0
    %487 = vmatpush1.msra.mxu0 0.0
    %488 = vmatprep.subr.mxu0 0.0
    %489 = vmatpush1.msra.mxu0 0.0
    %490 = vmatprep.subr.mxu0 0.0
    %491 = vmatpush1.msra.mxu0 0.0
    %492 = vmatprep.subr.mxu0 0.0
    %493 = vmatpush1.msra.mxu0 0.0
    %494 = vmatprep.subr.mxu0 0.0
    %495 = vmatpush1.msra.mxu0 0.0
    %496 = vmatprep.subr.mxu0 0.0
    %497 = vmatpush1.msra.mxu0 0.0
    %498 = vmatprep.subr.mxu0 0.0
    %499 = vmatpush1.msra.mxu0 0.0
    %500 = vmatprep.subr.mxu0 0.0
    %501 = vmatpush1.msra.mxu0 0.0
    %502 = vmatprep.subr.mxu0 0.0
    %503 = vmatpush1.msra.mxu0 0.0
    %504 = vmatprep.mubr.f32.mxu0 0.0
    %505 = vmatmul.mubr.f32.gmra.mrb[0].mxu0 %v438
    %v506 = vpop.f32.mrb[0].mxu0
    %v507 = vadd.f32 0.0, %v506
    %v508 = vpop.f32.mrb[0].mxu0
    %509 = vdwg.mxu0
    %v510 = vadd.f32 %v189, %v507
    %v511 = vxor.u32 %v510, 2147483648
    %v512 = vmul.f32 %v511, 1.442695
    %v513 = vpow.pop %v512
    %v514 = vadd.f32 %v513, 1.0
    %v515 = vrcp.pop %v514
    %v516 = vmul.f32 1.0, %v515
    %v517 = vtanh.pop %v510
    %v518 = vmul.f32 %v516, %v428
    %520 = vrot.lane.b32.xlu0 %v517, 32
    %v521 = vpop.permute.xlu0 %520
    %v523 = vmul.f32 %v516, %v521
    %525 = vrot.lane.b32.xlu0 %v523, 32
    %v526 = vpop.permute.xlu0 %525
    %v528 = vadd.f32 %v518, %v526
    %v529 = vtanh.pop %v528
    %531 = vrot.lane.b32.xlu0 %v529, 32
    %v532 = vpop.permute.xlu0 %531
    %v534 = vmul.f32 %v516, %v532
    %536 = vrot.lane.b32.xlu0 %v534, 64
    %v537 = vpop.permute.xlu0 %536
    %v538 = vsel %vm233, %v537, 0
    %540 = vmatprep.subr.mxu0 0.0
    %541 = vmatpush1.msra.mxu0 %v71
    %542 = vmatprep.subr.mxu0 0.0
    %543 = vmatpush1.msra.mxu0 %v72
    %544 = vmatprep.subr.mxu0 0.0
    %545 = vmatpush1.msra.mxu0 %v73
    %546 = vmatprep.subr.mxu0 0.0
    %547 = vmatpush1.msra.mxu0 %v74
    %548 = vmatprep.subr.mxu0 0.0
    %549 = vmatpush1.msra.mxu0 0.0
    %550 = vmatprep.subr.mxu0 0.0
    %551 = vmatpush1.msra.mxu0 0.0
    %552 = vmatprep.subr.mxu0 0.0
    %553 = vmatpush1.msra.mxu0 0.0
    %554 = vmatprep.subr.mxu0 0.0
    %555 = vmatpush1.msra.mxu0 0.0
    %556 = vmatprep.subr.mxu0 0.0
    %557 = vmatpush1.msra.mxu0 0.0
    %558 = vmatprep.subr.mxu0 0.0
    %559 = vmatpush1.msra.mxu0 0.0
    %560 = vmatprep.subr.mxu0 0.0
    %561 = vmatpush1.msra.mxu0 0.0
    %562 = vmatprep.subr.mxu0 0.0
    %563 = vmatpush1.msra.mxu0 0.0
    %564 = vmatprep.subr.mxu0 0.0
    %565 = vmatpush1.msra.mxu0 0.0
    %566 = vmatprep.subr.mxu0 0.0
    %567 = vmatpush1.msra.mxu0 0.0
    %568 = vmatprep.subr.mxu0 0.0
    %569 = vmatpush1.msra.mxu0 0.0
    %570 = vmatprep.subr.mxu0 0.0
    %571 = vmatpush1.msra.mxu0 0.0
    %572 = vmatprep.subr.mxu0 0.0
    %573 = vmatpush1.msra.mxu0 0.0
    %574 = vmatprep.subr.mxu0 0.0
    %575 = vmatpush1.msra.mxu0 0.0
    %576 = vmatprep.subr.mxu0 0.0
    %577 = vmatpush1.msra.mxu0 0.0
    %578 = vmatprep.subr.mxu0 0.0
    %579 = vmatpush1.msra.mxu0 0.0
    %580 = vmatprep.subr.mxu0 0.0
    %581 = vmatpush1.msra.mxu0 0.0
    %582 = vmatprep.subr.mxu0 0.0
    %583 = vmatpush1.msra.mxu0 0.0
    %584 = vmatprep.subr.mxu0 0.0
    %585 = vmatpush1.msra.mxu0 0.0
    %586 = vmatprep.subr.mxu0 0.0
    %587 = vmatpush1.msra.mxu0 0.0
    %588 = vmatprep.subr.mxu0 0.0
    %589 = vmatpush1.msra.mxu0 0.0
    %590 = vmatprep.subr.mxu0 0.0
    %591 = vmatpush1.msra.mxu0 0.0
    %592 = vmatprep.subr.mxu0 0.0
    %593 = vmatpush1.msra.mxu0 0.0
    %594 = vmatprep.subr.mxu0 0.0
    %595 = vmatpush1.msra.mxu0 0.0
    %596 = vmatprep.subr.mxu0 0.0
    %597 = vmatpush1.msra.mxu0 0.0
    %598 = vmatprep.subr.mxu0 0.0
    %599 = vmatpush1.msra.mxu0 0.0
    %600 = vmatprep.subr.mxu0 0.0
    %601 = vmatpush1.msra.mxu0 0.0
    %602 = vmatprep.subr.mxu0 0.0
    %603 = vmatpush1.msra.mxu0 0.0
    %604 = vmatprep.mubr.f32.mxu0 0.0
    %605 = vmatmul.mubr.f32.gmra.mrb[0].mxu0 %v538
    %v606 = vpop.f32.mrb[0].mxu0
    %v607 = vadd.f32 0.0, %v606
    %v608 = vpop.f32.mrb[0].mxu0
    %609 = vdwg.mxu0
    %v610 = vadd.f32 %v194, %v607
    %v611 = vxor.u32 %v610, 2147483648
    %v612 = vmul.f32 %v611, 1.442695
    %v613 = vpow.pop %v612
    %v614 = vadd.f32 %v613, 1.0
    %v615 = vrcp.pop %v614
    %v616 = vmul.f32 1.0, %v615
    %v617 = vtanh.pop %v610
    %v618 = vmul.f32 %v616, %v528
    %620 = vrot.lane.b32.xlu0 %v617, 32
    %v621 = vpop.permute.xlu0 %620
    %v623 = vmul.f32 %v616, %v621
    %625 = vrot.lane.b32.xlu0 %v623, 32
    %v626 = vpop.permute.xlu0 %625
    %v628 = vadd.f32 %v618, %v626
    %v629 = vtanh.pop %v628
    %631 = vrot.lane.b32.xlu0 %v629, 32
    %v632 = vpop.permute.xlu0 %631
    %v634 = vmul.f32 %v616, %v632
    %636 = vrot.lane.b32.xlu0 %v634, 64
    %v637 = vpop.permute.xlu0 %636
    %v638 = vsel %vm233, %v637, 0
    %640 = vmatprep.subr.mxu0 0.0
    %641 = vmatpush1.msra.mxu0 %v71
    %642 = vmatprep.subr.mxu0 0.0
    %643 = vmatpush1.msra.mxu0 %v72
    %644 = vmatprep.subr.mxu0 0.0
    %645 = vmatpush1.msra.mxu0 %v73
    %646 = vmatprep.subr.mxu0 0.0
    %647 = vmatpush1.msra.mxu0 %v74
    %648 = vmatprep.subr.mxu0 0.0
    %649 = vmatpush1.msra.mxu0 0.0
    %650 = vmatprep.subr.mxu0 0.0
    %651 = vmatpush1.msra.mxu0 0.0
    %652 = vmatprep.subr.mxu0 0.0
    %653 = vmatpush1.msra.mxu0 0.0
    %654 = vmatprep.subr.mxu0 0.0
    %655 = vmatpush1.msra.mxu0 0.0
    %656 = vmatprep.subr.mxu0 0.0
    %657 = vmatpush1.msra.mxu0 0.0
    %658 = vmatprep.subr.mxu0 0.0
    %659 = vmatpush1.msra.mxu0 0.0
    %660 = vmatprep.subr.mxu0 0.0
    %661 = vmatpush1.msra.mxu0 0.0
    %662 = vmatprep.subr.mxu0 0.0
    %663 = vmatpush1.msra.mxu0 0.0
    %664 = vmatprep.subr.mxu0 0.0
    %665 = vmatpush1.msra.mxu0 0.0
    %666 = vmatprep.subr.mxu0 0.0
    %667 = vmatpush1.msra.mxu0 0.0
    %668 = vmatprep.subr.mxu0 0.0
    %669 = vmatpush1.msra.mxu0 0.0
    %670 = vmatprep.subr.mxu0 0.0
    %671 = vmatpush1.msra.mxu0 0.0
    %672 = vmatprep.subr.mxu0 0.0
    %673 = vmatpush1.msra.mxu0 0.0
    %674 = vmatprep.subr.mxu0 0.0
    %675 = vmatpush1.msra.mxu0 0.0
    %676 = vmatprep.subr.mxu0 0.0
    %677 = vmatpush1.msra.mxu0 0.0
    %678 = vmatprep.subr.mxu0 0.0
    %679 = vmatpush1.msra.mxu0 0.0
    %680 = vmatprep.subr.mxu0 0.0
    %681 = vmatpush1.msra.mxu0 0.0
    %682 = vmatprep.subr.mxu0 0.0
    %683 = vmatpush1.msra.mxu0 0.0
    %684 = vmatprep.subr.mxu0 0.0
    %685 = vmatpush1.msra.mxu0 0.0
    %686 = vmatprep.subr.mxu0 0.0
    %687 = vmatpush1.msra.mxu0 0.0
    %688 = vmatprep.subr.mxu0 0.0
    %689 = vmatpush1.msra.mxu0 0.0
    %690 = vmatprep.subr.mxu0 0.0
    %691 = vmatpush1.msra.mxu0 0.0
    %692 = vmatprep.subr.mxu0 0.0
    %693 = vmatpush1.msra.mxu0 0.0
    %694 = vmatprep.subr.mxu0 0.0
    %695 = vmatpush1.msra.mxu0 0.0
    %696 = vmatprep.subr.mxu0 0.0
    %697 = vmatpush1.msra.mxu0 0.0
    %698 = vmatprep.subr.mxu0 0.0
    %699 = vmatpush1.msra.mxu0 0.0
    %700 = vmatprep.subr.mxu0 0.0
    %701 = vmatpush1.msra.mxu0 0.0
    %702 = vmatprep.subr.mxu0 0.0
    %703 = vmatpush1.msra.mxu0 0.0
    %704 = vmatprep.mubr.f32.mxu0 0.0
    %705 = vmatmul.mubr.f32.gmra.mrb[0].mxu0 %v638
    %v706 = vpop.f32.mrb[0].mxu0
    %v707 = vadd.f32 0.0, %v706
    %v708 = vpop.f32.mrb[0].mxu0
    %709 = vdwg.mxu0
    %v710 = vadd.f32 %v199, %v707
    %v711 = vxor.u32 %v710, 2147483648
    %v712 = vmul.f32 %v711, 1.442695
    %v713 = vpow.pop %v712
    %v714 = vadd.f32 %v713, 1.0
    %v715 = vrcp.pop %v714
    %v716 = vmul.f32 1.0, %v715
    %v717 = vtanh.pop %v710
    %v718 = vmul.f32 %v716, %v628
    %720 = vrot.lane.b32.xlu0 %v717, 32
    %v721 = vpop.permute.xlu0 %720
    %v723 = vmul.f32 %v716, %v721
    %725 = vrot.lane.b32.xlu0 %v723, 32
    %v726 = vpop.permute.xlu0 %725
    %v728 = vadd.f32 %v718, %v726
    %v729 = vtanh.pop %v728
    %731 = vrot.lane.b32.xlu0 %v729, 32
    %v732 = vpop.permute.xlu0 %731
    %v734 = vmul.f32 %v716, %v732
    %736 = vrot.lane.b32.xlu0 %v734, 64
    %v737 = vpop.permute.xlu0 %736
    %v738 = vsel %vm233, %v737, 0
    %740 = vmatprep.subr.mxu0 0.0
    %741 = vmatpush1.msra.mxu0 %v71
    %742 = vmatprep.subr.mxu0 0.0
    %743 = vmatpush1.msra.mxu0 %v72
    %744 = vmatprep.subr.mxu0 0.0
    %745 = vmatpush1.msra.mxu0 %v73
    %746 = vmatprep.subr.mxu0 0.0
    %747 = vmatpush1.msra.mxu0 %v74
    %748 = vmatprep.subr.mxu0 0.0
    %749 = vmatpush1.msra.mxu0 0.0
    %750 = vmatprep.subr.mxu0 0.0
    %751 = vmatpush1.msra.mxu0 0.0
    %752 = vmatprep.subr.mxu0 0.0
    %753 = vmatpush1.msra.mxu0 0.0
    %754 = vmatprep.subr.mxu0 0.0
    %755 = vmatpush1.msra.mxu0 0.0
    %756 = vmatprep.subr.mxu0 0.0
    %757 = vmatpush1.msra.mxu0 0.0
    %758 = vmatprep.subr.mxu0 0.0
    %759 = vmatpush1.msra.mxu0 0.0
    %760 = vmatprep.subr.mxu0 0.0
    %761 = vmatpush1.msra.mxu0 0.0
    %762 = vmatprep.subr.mxu0 0.0
    %763 = vmatpush1.msra.mxu0 0.0
    %764 = vmatprep.subr.mxu0 0.0
    %765 = vmatpush1.msra.mxu0 0.0
    %766 = vmatprep.subr.mxu0 0.0
    %767 = vmatpush1.msra.mxu0 0.0
    %768 = vmatprep.subr.mxu0 0.0
    %769 = vmatpush1.msra.mxu0 0.0
    %770 = vmatprep.subr.mxu0 0.0
    %771 = vmatpush1.msra.mxu0 0.0
    %772 = vmatprep.subr.mxu0 0.0
    %773 = vmatpush1.msra.mxu0 0.0
    %774 = vmatprep.subr.mxu0 0.0
    %775 = vmatpush1.msra.mxu0 0.0
    %776 = vmatprep.subr.mxu0 0.0
    %777 = vmatpush1.msra.mxu0 0.0
    %778 = vmatprep.subr.mxu0 0.0
    %779 = vmatpush1.msra.mxu0 0.0
    %780 = vmatprep.subr.mxu0 0.0
    %781 = vmatpush1.msra.mxu0 0.0
    %782 = vmatprep.subr.mxu0 0.0
    %783 = vmatpush1.msra.mxu0 0.0
    %784 = vmatprep.subr.mxu0 0.0
    %785 = vmatpush1.msra.mxu0 0.0
    %786 = vmatprep.subr.mxu0 0.0
    %787 = vmatpush1.msra.mxu0 0.0
    %788 = vmatprep.subr.mxu0 0.0
    %789 = vmatpush1.msra.mxu0 0.0
    %790 = vmatprep.subr.mxu0 0.0
    %791 = vmatpush1.msra.mxu0 0.0
    %792 = vmatprep.subr.mxu0 0.0
    %793 = vmatpush1.msra.mxu0 0.0
    %794 = vmatprep.subr.mxu0 0.0
    %795 = vmatpush1.msra.mxu0 0.0
    %796 = vmatprep.subr.mxu0 0.0
    %797 = vmatpush1.msra.mxu0 0.0
    %798 = vmatprep.subr.mxu0 0.0
    %799 = vmatpush1.msra.mxu0 0.0
    %800 = vmatprep.subr.mxu0 0.0
    %801 = vmatpush1.msra.mxu0 0.0
    %802 = vmatprep.subr.mxu0 0.0
    %803 = vmatpush1.msra.mxu0 0.0
    %804 = vmatprep.mubr.f32.mxu0 0.0
    %805 = vmatmul.mubr.f32.gmra.mrb[0].mxu0 %v738
    %v806 = vpop.f32.mrb[0].mxu0
    %v807 = vadd.f32 0.0, %v806
    %v808 = vpop.f32.mrb[0].mxu0
    %809 = vdwg.mxu0
    %v810 = vadd.f32 %v204, %v807
    %v811 = vxor.u32 %v810, 2147483648
    %v812 = vmul.f32 %v811, 1.442695
    %v813 = vpow.pop %v812
    %v814 = vadd.f32 %v813, 1.0
    %v815 = vrcp.pop %v814
    %v816 = vmul.f32 1.0, %v815
    %v817 = vtanh.pop %v810
    %v818 = vmul.f32 %v816, %v728
    %820 = vrot.lane.b32.xlu0 %v817, 32
    %v821 = vpop.permute.xlu0 %820
    %v823 = vmul.f32 %v816, %v821
    %825 = vrot.lane.b32.xlu0 %v823, 32
    %v826 = vpop.permute.xlu0 %825
    %v828 = vadd.f32 %v818, %v826
    %v829 = vtanh.pop %v828
    %831 = vrot.lane.b32.xlu0 %v829, 32
    %v832 = vpop.permute.xlu0 %831
    %v834 = vmul.f32 %v816, %v832
    %836 = vrot.lane.b32.xlu0 %v834, 64
    %v837 = vpop.permute.xlu0 %836
    %v838 = vsel %vm233, %v837, 0
    %840 = vmatprep.subr.mxu0 0.0
    %841 = vmatpush1.msra.mxu0 %v71
    %842 = vmatprep.subr.mxu0 0.0
    %843 = vmatpush1.msra.mxu0 %v72
    %844 = vmatprep.subr.mxu0 0.0
    %845 = vmatpush1.msra.mxu0 %v73
    %846 = vmatprep.subr.mxu0 0.0
    %847 = vmatpush1.msra.mxu0 %v74
    %848 = vmatprep.subr.mxu0 0.0
    %849 = vmatpush1.msra.mxu0 0.0
    %850 = vmatprep.subr.mxu0 0.0
    %851 = vmatpush1.msra.mxu0 0.0
    %852 = vmatprep.subr.mxu0 0.0
    %853 = vmatpush1.msra.mxu0 0.0
    %854 = vmatprep.subr.mxu0 0.0
    %855 = vmatpush1.msra.mxu0 0.0
    %856 = vmatprep.subr.mxu0 0.0
    %857 = vmatpush1.msra.mxu0 0.0
    %858 = vmatprep.subr.mxu0 0.0
    %859 = vmatpush1.msra.mxu0 0.0
    %860 = vmatprep.subr.mxu0 0.0
    %861 = vmatpush1.msra.mxu0 0.0
    %862 = vmatprep.subr.mxu0 0.0
    %863 = vmatpush1.msra.mxu0 0.0
    %864 = vmatprep.subr.mxu0 0.0
    %865 = vmatpush1.msra.mxu0 0.0
    %866 = vmatprep.subr.mxu0 0.0
    %867 = vmatpush1.msra.mxu0 0.0
    %868 = vmatprep.subr.mxu0 0.0
    %869 = vmatpush1.msra.mxu0 0.0
    %870 = vmatprep.subr.mxu0 0.0
    %871 = vmatpush1.msra.mxu0 0.0
    %872 = vmatprep.subr.mxu0 0.0
    %873 = vmatpush1.msra.mxu0 0.0
    %874 = vmatprep.subr.mxu0 0.0
    %875 = vmatpush1.msra.mxu0 0.0
    %876 = vmatprep.subr.mxu0 0.0
    %877 = vmatpush1.msra.mxu0 0.0
    %878 = vmatprep.subr.mxu0 0.0
    %879 = vmatpush1.msra.mxu0 0.0
    %880 = vmatprep.subr.mxu0 0.0
    %881 = vmatpush1.msra.mxu0 0.0
    %882 = vmatprep.subr.mxu0 0.0
    %883 = vmatpush1.msra.mxu0 0.0
    %884 = vmatprep.subr.mxu0 0.0
    %885 = vmatpush1.msra.mxu0 0.0
    %886 = vmatprep.subr.mxu0 0.0
    %887 = vmatpush1.msra.mxu0 0.0
    %888 = vmatprep.subr.mxu0 0.0
    %889 = vmatpush1.msra.mxu0 0.0
    %890 = vmatprep.subr.mxu0 0.0
    %891 = vmatpush1.msra.mxu0 0.0
    %892 = vmatprep.subr.mxu0 0.0
    %893 = vmatpush1.msra.mxu0 0.0
    %894 = vmatprep.subr.mxu0 0.0
    %895 = vmatpush1.msra.mxu0 0.0
    %896 = vmatprep.subr.mxu0 0.0
    %897 = vmatpush1.msra.mxu0 0.0
    %898 = vmatprep.subr.mxu0 0.0
    %899 = vmatpush1.msra.mxu0 0.0
    %900 = vmatprep.subr.mxu0 0.0
    %901 = vmatpush1.msra.mxu0 0.0
    %902 = vmatprep.subr.mxu0 0.0
    %903 = vmatpush1.msra.mxu0 0.0
    %904 = vmatprep.mubr.f32.mxu0 0.0
    %905 = vmatmul.mubr.f32.gmra.mrb[0].mxu0 %v838
    %v906 = vpop.f32.mrb[0].mxu0
    %v907 = vadd.f32 0.0, %v906
    %v908 = vpop.f32.mrb[0].mxu0
    %909 = vdwg.mxu0
    %v910 = vadd.f32 %v209, %v907
    %v911 = vxor.u32 %v910, 2147483648
    %v912 = vmul.f32 %v911, 1.442695
    %v913 = vpow.pop %v912
    %v914 = vadd.f32 %v913, 1.0
    %v915 = vrcp.pop %v914
    %v916 = vmul.f32 1.0, %v915
    %v917 = vtanh.pop %v910
    %v918 = vmul.f32 %v916, %v828
    %920 = vrot.lane.b32.xlu0 %v917, 32
    %v921 = vpop.permute.xlu0 %920
    %v923 = vmul.f32 %v916, %v921
    %925 = vrot.lane.b32.xlu0 %v923, 32
    %v926 = vpop.permute.xlu0 %925
    %v928 = vadd.f32 %v918, %v926
    %v929 = vtanh.pop %v928
    %931 = vrot.lane.b32.xlu0 %v929, 32
    %v932 = vpop.permute.xlu0 %931
    %v934 = vmul.f32 %v916, %v932
    %v935 = vld [vmem:[%s4] sm:$0xff]
    %v936 = vld [vmem:[%s4 + $0x8] sm:$0xff]
    %v937 = vld [vmem:[%s4 + $0x10] sm:$0xff]
    %v938 = vld [vmem:[%s4 + $0x18] sm:$0xff]
    %v939 = vld [vmem:[%s5] sm:$0xff]
    %v940 = vld [vmem:[%s5 + $0x8] sm:$0xff]
    %v941 = vld [vmem:[%s5 + $0x10] sm:$0xff]
    %v942 = vld [vmem:[%s5 + $0x18] sm:$0xff]
    %v943 = vld [vmem:[%s6] sm:$0x1]
    %v945 = vlaneseq
    %v946 = vshrl.u32 %v945, 7
    %v947 = vsub.s32 0, %v946
    %v948 = vrot.slane %v943, %v947
    %951 = vrot.lane.b32.xlu0 %v934, 64
    %v952 = vpop.permute.xlu0 %951
    %v953 = vsel %vm233, %v952, 0
    %955 = vmatprep.subr.mxu0 0.0
    %956 = vmatpush1.msra.mxu0 %v935
    %957 = vmatprep.subr.mxu0 0.0
    %958 = vmatpush1.msra.mxu0 %v936
    %959 = vmatprep.subr.mxu0 0.0
    %960 = vmatpush1.msra.mxu0 %v937
    %961 = vmatprep.subr.mxu0 0.0
    %962 = vmatpush1.msra.mxu0 %v938
    %963 = vmatprep.subr.mxu0 0.0
    %964 = vmatpush1.msra.mxu0 0.0
    %965 = vmatprep.subr.mxu0 0.0
    %966 = vmatpush1.msra.mxu0 0.0
    %967 = vmatprep.subr.mxu0 0.0
    %968 = vmatpush1.msra.mxu0 0.0
    %969 = vmatprep.subr.mxu0 0.0
    %970 = vmatpush1.msra.mxu0 0.0
    %971 = vmatprep.subr.mxu0 0.0
    %972 = vmatpush1.msra.mxu0 0.0
    %973 = vmatprep.subr.mxu0 0.0
    %974 = vmatpush1.msra.mxu0 0.0
    %975 = vmatprep.subr.mxu0 0.0
    %976 = vmatpush1.msra.mxu0 0.0
    %977 = vmatprep.subr.mxu0 0.0
    %978 = vmatpush1.msra.mxu0 0.0
    %979 = vmatprep.subr.mxu0 0.0
    %980 = vmatpush1.msra.mxu0 0.0
    %981 = vmatprep.subr.mxu0 0.0
    %982 = vmatpush1.msra.mxu0 0.0
    %983 = vmatprep.subr.mxu0 0.0
    %984 = vmatpush1.msra.mxu0 0.0
    %985 = vmatprep.subr.mxu0 0.0
    %986 = vmatpush1.msra.mxu0 0.0
    %987 = vmatprep.subr.mxu0 0.0
    %988 = vmatpush1.msra.mxu0 0.0
    %989 = vmatprep.subr.mxu0 0.0
    %990 = vmatpush1.msra.mxu0 0.0
    %991 = vmatprep.subr.mxu0 0.0
    %992 = vmatpush1.msra.mxu0 0.0
    %993 = vmatprep.subr.mxu0 0.0
    %994 = vmatpush1.msra.mxu0 0.0
    %995 = vmatprep.subr.mxu0 0.0
    %996 = vmatpush1.msra.mxu0 0.0
    %997 = vmatprep.subr.mxu0 0.0
    %998 = vmatpush1.msra.mxu0 0.0
    %999 = vmatprep.subr.mxu0 0.0
    %1000 = vmatpush1.msra.mxu0 0.0
    %1001 = vmatprep.subr.mxu0 0.0
    %1002 = vmatpush1.msra.mxu0 0.0
    %1003 = vmatprep.subr.mxu0 0.0
    %1004 = vmatpush1.msra.mxu0 0.0
    %1005 = vmatprep.subr.mxu0 0.0
    %1006 = vmatpush1.msra.mxu0 0.0
    %1007 = vmatprep.subr.mxu0 0.0
    %1008 = vmatpush1.msra.mxu0 0.0
    %1009 = vmatprep.subr.mxu0 0.0
    %1010 = vmatpush1.msra.mxu0 0.0
    %1011 = vmatprep.subr.mxu0 0.0
    %1012 = vmatpush1.msra.mxu0 0.0
    %1013 = vmatprep.subr.mxu0 0.0
    %1014 = vmatpush1.msra.mxu0 0.0
    %1015 = vmatprep.subr.mxu0 0.0
    %1016 = vmatpush1.msra.mxu0 0.0
    %1017 = vmatprep.subr.mxu0 0.0
    %1018 = vmatpush1.msra.mxu0 0.0
    %1019 = vmatprep.mubr.f32.mxu0 0.0
    %1020 = vmatmul.mubr.f32.gmra.mrb[0].mxu0 %v234
    %v1021 = vpop.f32.mrb[0].mxu0
    %v1022 = vadd.f32 %v948, %v1021
    %v1023 = vpop.f32.mrb[0].mxu0
    %1024 = vmatprep.mubr.f32.mxu0 0.0
    %1025 = vmatmul.mubr.f32.gmra.mrb[0].mxu0 %v338
    %v1026 = vpop.f32.mrb[0].mxu0
    %v1027 = vadd.f32 %v948, %v1026
    %v1028 = vpop.f32.mrb[0].mxu0
    %1029 = vmatprep.mubr.f32.mxu0 0.0
    %1030 = vmatmul.mubr.f32.gmra.mrb[0].mxu0 %v438
    %v1031 = vpop.f32.mrb[0].mxu0
    %v1032 = vadd.f32 %v948, %v1031
    %v1033 = vpop.f32.mrb[0].mxu0
    %1034 = vmatprep.mubr.f32.mxu0 0.0
    %1035 = vmatmul.mubr.f32.gmra.mrb[0].mxu0 %v538
    %v1036 = vpop.f32.mrb[0].mxu0
    %v1037 = vadd.f32 %v948, %v1036
    %v1038 = vpop.f32.mrb[0].mxu0
    %1039 = vmatprep.mubr.f32.mxu0 0.0
    %1040 = vmatmul.mubr.f32.gmra.mrb[0].mxu0 %v638
    %v1041 = vpop.f32.mrb[0].mxu0
    %v1042 = vadd.f32 %v948, %v1041
    %v1043 = vpop.f32.mrb[0].mxu0
    %1044 = vmatprep.mubr.f32.mxu0 0.0
    %1045 = vmatmul.mubr.f32.gmra.mrb[0].mxu0 %v738
    %v1046 = vpop.f32.mrb[0].mxu0
    %v1047 = vadd.f32 %v948, %v1046
    %v1048 = vpop.f32.mrb[0].mxu0
    %1049 = vmatprep.mubr.f32.mxu0 0.0
    %1050 = vmatmul.mubr.f32.gmra.mrb[0].mxu0 %v838
    %v1051 = vpop.f32.mrb[0].mxu0
    %v1052 = vadd.f32 %v948, %v1051
    %v1053 = vpop.f32.mrb[0].mxu0
    %1054 = vmatprep.mubr.f32.mxu0 0.0
    %1055 = vmatmul.mubr.f32.gmra.mrb[0].mxu0 %v953
    %v1056 = vpop.f32.mrb[0].mxu0
    %v1057 = vadd.f32 %v948, %v1056
    %v1058 = vpop.f32.mrb[0].mxu0
    %1059 = vdwg.mxu0
    %v1060 = vxor.u32 %v1022, 2147483648
    %v1061 = vmul.f32 %v1060, 1.442695
    %v1062 = vpow.pop %v1061
    %v1063 = vadd.f32 %v1062, 1.0
    %v1064 = vrcp.pop %v1063
    %v1065 = vmul.f32 1.0, %v1064
    %v1066 = vtanh.pop %v1022
    %1068 = vrot.lane.b32.xlu0 %v1066, 32
    %v1069 = vpop.permute.xlu0 %1068
    %v1071 = vmul.f32 %v1065, %v1069
    %v1072 = vtanh.pop %v1071
    %1074 = vrot.lane.b32.xlu0 %v1072, 64
    %v1075 = vpop.permute.xlu0 %1074
    %v1077 = vmul.f32 %v1065, %v1075
    %1079 = vrot.lane.b32.xlu0 %v1077, 64
    %v1080 = vpop.permute.xlu0 %1079
    %v1081 = vsel %vm233, %v1080, 0
    %1083 = vmatprep.subr.mxu0 0.0
    %1084 = vmatpush1.msra.mxu0 %v939
    %1085 = vmatprep.subr.mxu0 0.0
    %1086 = vmatpush1.msra.mxu0 %v940
    %1087 = vmatprep.subr.mxu0 0.0
    %1088 = vmatpush1.msra.mxu0 %v941
    %1089 = vmatprep.subr.mxu0 0.0
    %1090 = vmatpush1.msra.mxu0 %v942
    %1091 = vmatprep.subr.mxu0 0.0
    %1092 = vmatpush1.msra.mxu0 0.0
    %1093 = vmatprep.subr.mxu0 0.0
    %1094 = vmatpush1.msra.mxu0 0.0
    %1095 = vmatprep.subr.mxu0 0.0
    %1096 = vmatpush1.msra.mxu0 0.0
    %1097 = vmatprep.subr.mxu0 0.0
    %1098 = vmatpush1.msra.mxu0 0.0
    %1099 = vmatprep.subr.mxu0 0.0
    %1100 = vmatpush1.msra.mxu0 0.0
    %1101 = vmatprep.subr.mxu0 0.0
    %1102 = vmatpush1.msra.mxu0 0.0
    %1103 = vmatprep.subr.mxu0 0.0
    %1104 = vmatpush1.msra.mxu0 0.0
    %1105 = vmatprep.subr.mxu0 0.0
    %1106 = vmatpush1.msra.mxu0 0.0
    %1107 = vmatprep.subr.mxu0 0.0
    %1108 = vmatpush1.msra.mxu0 0.0
    %1109 = vmatprep.subr.mxu0 0.0
    %1110 = vmatpush1.msra.mxu0 0.0
    %1111 = vmatprep.subr.mxu0 0.0
    %1112 = vmatpush1.msra.mxu0 0.0
    %1113 = vmatprep.subr.mxu0 0.0
    %1114 = vmatpush1.msra.mxu0 0.0
    %1115 = vmatprep.subr.mxu0 0.0
    %1116 = vmatpush1.msra.mxu0 0.0
    %1117 = vmatprep.subr.mxu0 0.0
    %1118 = vmatpush1.msra.mxu0 0.0
    %1119 = vmatprep.subr.mxu0 0.0
    %1120 = vmatpush1.msra.mxu0 0.0
    %1121 = vmatprep.subr.mxu0 0.0
    %1122 = vmatpush1.msra.mxu0 0.0
    %1123 = vmatprep.subr.mxu0 0.0
    %1124 = vmatpush1.msra.mxu0 0.0
    %1125 = vmatprep.subr.mxu0 0.0
    %1126 = vmatpush1.msra.mxu0 0.0
    %1127 = vmatprep.subr.mxu0 0.0
    %1128 = vmatpush1.msra.mxu0 0.0
    %1129 = vmatprep.subr.mxu0 0.0
    %1130 = vmatpush1.msra.mxu0 0.0
    %1131 = vmatprep.subr.mxu0 0.0
    %1132 = vmatpush1.msra.mxu0 0.0
    %1133 = vmatprep.subr.mxu0 0.0
    %1134 = vmatpush1.msra.mxu0 0.0
    %1135 = vmatprep.subr.mxu0 0.0
    %1136 = vmatpush1.msra.mxu0 0.0
    %1137 = vmatprep.subr.mxu0 0.0
    %1138 = vmatpush1.msra.mxu0 0.0
    %1139 = vmatprep.subr.mxu0 0.0
    %1140 = vmatpush1.msra.mxu0 0.0
    %1141 = vmatprep.subr.mxu0 0.0
    %1142 = vmatpush1.msra.mxu0 0.0
    %1143 = vmatprep.subr.mxu0 0.0
    %1144 = vmatpush1.msra.mxu0 0.0
    %1145 = vmatprep.subr.mxu0 0.0
    %1146 = vmatpush1.msra.mxu0 0.0
    %1147 = vmatprep.mubr.f32.mxu0 0.0
    %1148 = vmatmul.mubr.f32.gmra.mrb[0].mxu0 %v1081
    %v1149 = vpop.f32.mrb[0].mxu0
    %v1150 = vadd.f32 0.0, %v1149
    %v1151 = vpop.f32.mrb[0].mxu0
    %1152 = vdwg.mxu0
    %v1153 = vadd.f32 %v1027, %v1150
    %v1154 = vxor.u32 %v1153, 2147483648
    %v1155 = vmul.f32 %v1154, 1.442695
    %v1156 = vpow.pop %v1155
    %v1157 = vadd.f32 %v1156, 1.0
    %v1158 = vrcp.pop %v1157
    %v1159 = vmul.f32 1.0, %v1158
    %v1160 = vtanh.pop %v1153
    %1162 = vrot.lane.b32.xlu0 %v1071, 32
    %v1163 = vpop.permute.xlu0 %1162
    %v1165 = vmul.f32 %v1159, %v1163
    %1167 = vrot.lane.b32.xlu0 %v1160, 32
    %v1168 = vpop.permute.xlu0 %1167
    %v1170 = vmul.f32 %v1159, %v1168
    %1172 = vrot.lane.b32.xlu0 %v1170, 32
    %v1173 = vpop.permute.xlu0 %1172
    %v1175 = vadd.f32 %v1165, %v1173
    %v1176 = vtanh.pop %v1175
    %1178 = vrot.lane.b32.xlu0 %v1176, 32
    %v1179 = vpop.permute.xlu0 %1178
    %v1181 = vmul.f32 %v1159, %v1179
    %1183 = vrot.lane.b32.xlu0 %v1181, 64
    %v1184 = vpop.permute.xlu0 %1183
    %v1185 = vsel %vm233, %v1184, 0
    %1187 = vmatprep.subr.mxu0 0.0
    %1188 = vmatpush1.msra.mxu0 %v939
    %1189 = vmatprep.subr.mxu0 0.0
    %1190 = vmatpush1.msra.mxu0 %v940
    %1191 = vmatprep.subr.mxu0 0.0
    %1192 = vmatpush1.msra.mxu0 %v941
    %1193 = vmatprep.subr.mxu0 0.0
    %1194 = vmatpush1.msra.mxu0 %v942
    %1195 = vmatprep.subr.mxu0 0.0
    %1196 = vmatpush1.msra.mxu0 0.0
    %1197 = vmatprep.subr.mxu0 0.0
    %1198 = vmatpush1.msra.mxu0 0.0
    %1199 = vmatprep.subr.mxu0 0.0
    %1200 = vmatpush1.msra.mxu0 0.0
    %1201 = vmatprep.subr.mxu0 0.0
    %1202 = vmatpush1.msra.mxu0 0.0
    %1203 = vmatprep.subr.mxu0 0.0
    %1204 = vmatpush1.msra.mxu0 0.0
    %1205 = vmatprep.subr.mxu0 0.0
    %1206 = vmatpush1.msra.mxu0 0.0
    %1207 = vmatprep.subr.mxu0 0.0
    %1208 = vmatpush1.msra.mxu0 0.0
    %1209 = vmatprep.subr.mxu0 0.0
    %1210 = vmatpush1.msra.mxu0 0.0
    %1211 = vmatprep.subr.mxu0 0.0
    %1212 = vmatpush1.msra.mxu0 0.0
    %1213 = vmatprep.subr.mxu0 0.0
    %1214 = vmatpush1.msra.mxu0 0.0
    %1215 = vmatprep.subr.mxu0 0.0
    %1216 = vmatpush1.msra.mxu0 0.0
    %1217 = vmatprep.subr.mxu0 0.0
    %1218 = vmatpush1.msra.mxu0 0.0
    %1219 = vmatprep.subr.mxu0 0.0
    %1220 = vmatpush1.msra.mxu0 0.0
    %1221 = vmatprep.subr.mxu0 0.0
    %1222 = vmatpush1.msra.mxu0 0.0
    %1223 = vmatprep.subr.mxu0 0.0
    %1224 = vmatpush1.msra.mxu0 0.0
    %1225 = vmatprep.subr.mxu0 0.0
    %1226 = vmatpush1.msra.mxu0 0.0
    %1227 = vmatprep.subr.mxu0 0.0
    %1228 = vmatpush1.msra.mxu0 0.0
    %1229 = vmatprep.subr.mxu0 0.0
    %1230 = vmatpush1.msra.mxu0 0.0
    %1231 = vmatprep.subr.mxu0 0.0
    %1232 = vmatpush1.msra.mxu0 0.0
    %1233 = vmatprep.subr.mxu0 0.0
    %1234 = vmatpush1.msra.mxu0 0.0
    %1235 = vmatprep.subr.mxu0 0.0
    %1236 = vmatpush1.msra.mxu0 0.0
    %1237 = vmatprep.subr.mxu0 0.0
    %1238 = vmatpush1.msra.mxu0 0.0
    %1239 = vmatprep.subr.mxu0 0.0
    %1240 = vmatpush1.msra.mxu0 0.0
    %1241 = vmatprep.subr.mxu0 0.0
    %1242 = vmatpush1.msra.mxu0 0.0
    %1243 = vmatprep.subr.mxu0 0.0
    %1244 = vmatpush1.msra.mxu0 0.0
    %1245 = vmatprep.subr.mxu0 0.0
    %1246 = vmatpush1.msra.mxu0 0.0
    %1247 = vmatprep.subr.mxu0 0.0
    %1248 = vmatpush1.msra.mxu0 0.0
    %1249 = vmatprep.subr.mxu0 0.0
    %1250 = vmatpush1.msra.mxu0 0.0
    %1251 = vmatprep.mubr.f32.mxu0 0.0
    %1252 = vmatmul.mubr.f32.gmra.mrb[0].mxu0 %v1185
    %v1253 = vpop.f32.mrb[0].mxu0
    %v1254 = vadd.f32 0.0, %v1253
    %v1255 = vpop.f32.mrb[0].mxu0
    %1256 = vdwg.mxu0
    %v1257 = vadd.f32 %v1032, %v1254
    %v1258 = vxor.u32 %v1257, 2147483648
    %v1259 = vmul.f32 %v1258, 1.442695
    %v1260 = vpow.pop %v1259
    %v1261 = vadd.f32 %v1260, 1.0
    %v1262 = vrcp.pop %v1261
    %v1263 = vmul.f32 1.0, %v1262
    %v1264 = vtanh.pop %v1257
    %v1265 = vmul.f32 %v1263, %v1175
    %1267 = vrot.lane.b32.xlu0 %v1264, 32
    %v1268 = vpop.permute.xlu0 %1267
    %v1270 = vmul.f32 %v1263, %v1268
    %1272 = vrot.lane.b32.xlu0 %v1270, 32
    %v1273 = vpop.permute.xlu0 %1272
    %v1275 = vadd.f32 %v1265, %v1273
    %v1276 = vtanh.pop %v1275
    %1278 = vrot.lane.b32.xlu0 %v1276, 32
    %v1279 = vpop.permute.xlu0 %1278
    %v1281 = vmul.f32 %v1263, %v1279
    %1283 = vrot.lane.b32.xlu0 %v1281, 64
    %v1284 = vpop.permute.xlu0 %1283
    %v1285 = vsel %vm233, %v1284, 0
    %1287 = vmatprep.subr.mxu0 0.0
    %1288 = vmatpush1.msra.mxu0 %v939
    %1289 = vmatprep.subr.mxu0 0.0
    %1290 = vmatpush1.msra.mxu0 %v940
    %1291 = vmatprep.subr.mxu0 0.0
    %1292 = vmatpush1.msra.mxu0 %v941
    %1293 = vmatprep.subr.mxu0 0.0
    %1294 = vmatpush1.msra.mxu0 %v942
    %1295 = vmatprep.subr.mxu0 0.0
    %1296 = vmatpush1.msra.mxu0 0.0
    %1297 = vmatprep.subr.mxu0 0.0
    %1298 = vmatpush1.msra.mxu0 0.0
    %1299 = vmatprep.subr.mxu0 0.0
    %1300 = vmatpush1.msra.mxu0 0.0
    %1301 = vmatprep.subr.mxu0 0.0
    %1302 = vmatpush1.msra.mxu0 0.0
    %1303 = vmatprep.subr.mxu0 0.0
    %1304 = vmatpush1.msra.mxu0 0.0
    %1305 = vmatprep.subr.mxu0 0.0
    %1306 = vmatpush1.msra.mxu0 0.0
    %1307 = vmatprep.subr.mxu0 0.0
    %1308 = vmatpush1.msra.mxu0 0.0
    %1309 = vmatprep.subr.mxu0 0.0
    %1310 = vmatpush1.msra.mxu0 0.0
    %1311 = vmatprep.subr.mxu0 0.0
    %1312 = vmatpush1.msra.mxu0 0.0
    %1313 = vmatprep.subr.mxu0 0.0
    %1314 = vmatpush1.msra.mxu0 0.0
    %1315 = vmatprep.subr.mxu0 0.0
    %1316 = vmatpush1.msra.mxu0 0.0
    %1317 = vmatprep.subr.mxu0 0.0
    %1318 = vmatpush1.msra.mxu0 0.0
    %1319 = vmatprep.subr.mxu0 0.0
    %1320 = vmatpush1.msra.mxu0 0.0
    %1321 = vmatprep.subr.mxu0 0.0
    %1322 = vmatpush1.msra.mxu0 0.0
    %1323 = vmatprep.subr.mxu0 0.0
    %1324 = vmatpush1.msra.mxu0 0.0
    %1325 = vmatprep.subr.mxu0 0.0
    %1326 = vmatpush1.msra.mxu0 0.0
    %1327 = vmatprep.subr.mxu0 0.0
    %1328 = vmatpush1.msra.mxu0 0.0
    %1329 = vmatprep.subr.mxu0 0.0
    %1330 = vmatpush1.msra.mxu0 0.0
    %1331 = vmatprep.subr.mxu0 0.0
    %1332 = vmatpush1.msra.mxu0 0.0
    %1333 = vmatprep.subr.mxu0 0.0
    %1334 = vmatpush1.msra.mxu0 0.0
    %1335 = vmatprep.subr.mxu0 0.0
    %1336 = vmatpush1.msra.mxu0 0.0
    %1337 = vmatprep.subr.mxu0 0.0
    %1338 = vmatpush1.msra.mxu0 0.0
    %1339 = vmatprep.subr.mxu0 0.0
    %1340 = vmatpush1.msra.mxu0 0.0
    %1341 = vmatprep.subr.mxu0 0.0
    %1342 = vmatpush1.msra.mxu0 0.0
    %1343 = vmatprep.subr.mxu0 0.0
    %1344 = vmatpush1.msra.mxu0 0.0
    %1345 = vmatprep.subr.mxu0 0.0
    %1346 = vmatpush1.msra.mxu0 0.0
    %1347 = vmatprep.subr.mxu0 0.0
    %1348 = vmatpush1.msra.mxu0 0.0
    %1349 = vmatprep.subr.mxu0 0.0
    %1350 = vmatpush1.msra.mxu0 0.0
    %1351 = vmatprep.mubr.f32.mxu0 0.0
    %1352 = vmatmul.mubr.f32.gmra.mrb[0].mxu0 %v1285
    %v1353 = vpop.f32.mrb[0].mxu0
    %v1354 = vadd.f32 0.0, %v1353
    %v1355 = vpop.f32.mrb[0].mxu0
    %1356 = vdwg.mxu0
    %v1357 = vadd.f32 %v1037, %v1354
    %v1358 = vxor.u32 %v1357, 2147483648
    %v1359 = vmul.f32 %v1358, 1.442695
    %v1360 = vpow.pop %v1359
    %v1361 = vadd.f32 %v1360, 1.0
    %v1362 = vrcp.pop %v1361
    %v1363 = vmul.f32 1.0, %v1362
    %v1364 = vtanh.pop %v1357
    %v1365 = vmul.f32 %v1363, %v1275
    %1367 = vrot.lane.b32.xlu0 %v1364, 32
    %v1368 = vpop.permute.xlu0 %1367
    %v1370 = vmul.f32 %v1363, %v1368
    %1372 = vrot.lane.b32.xlu0 %v1370, 32
    %v1373 = vpop.permute.xlu0 %1372
    %v1375 = vadd.f32 %v1365, %v1373
    %v1376 = vtanh.pop %v1375
    %1378 = vrot.lane.b32.xlu0 %v1376, 32
    %v1379 = vpop.permute.xlu0 %1378
    %v1381 = vmul.f32 %v1363, %v1379
    %1383 = vrot.lane.b32.xlu0 %v1381, 64
    %v1384 = vpop.permute.xlu0 %1383
    %v1385 = vsel %vm233, %v1384, 0
    %1387 = vmatprep.subr.mxu0 0.0
    %1388 = vmatpush1.msra.mxu0 %v939
    %1389 = vmatprep.subr.mxu0 0.0
    %1390 = vmatpush1.msra.mxu0 %v940
    %1391 = vmatprep.subr.mxu0 0.0
    %1392 = vmatpush1.msra.mxu0 %v941
    %1393 = vmatprep.subr.mxu0 0.0
    %1394 = vmatpush1.msra.mxu0 %v942
    %1395 = vmatprep.subr.mxu0 0.0
    %1396 = vmatpush1.msra.mxu0 0.0
    %1397 = vmatprep.subr.mxu0 0.0
    %1398 = vmatpush1.msra.mxu0 0.0
    %1399 = vmatprep.subr.mxu0 0.0
    %1400 = vmatpush1.msra.mxu0 0.0
    %1401 = vmatprep.subr.mxu0 0.0
    %1402 = vmatpush1.msra.mxu0 0.0
    %1403 = vmatprep.subr.mxu0 0.0
    %1404 = vmatpush1.msra.mxu0 0.0
    %1405 = vmatprep.subr.mxu0 0.0
    %1406 = vmatpush1.msra.mxu0 0.0
    %1407 = vmatprep.subr.mxu0 0.0
    %1408 = vmatpush1.msra.mxu0 0.0
    %1409 = vmatprep.subr.mxu0 0.0
    %1410 = vmatpush1.msra.mxu0 0.0
    %1411 = vmatprep.subr.mxu0 0.0
    %1412 = vmatpush1.msra.mxu0 0.0
    %1413 = vmatprep.subr.mxu0 0.0
    %1414 = vmatpush1.msra.mxu0 0.0
    %1415 = vmatprep.subr.mxu0 0.0
    %1416 = vmatpush1.msra.mxu0 0.0
    %1417 = vmatprep.subr.mxu0 0.0
    %1418 = vmatpush1.msra.mxu0 0.0
    %1419 = vmatprep.subr.mxu0 0.0
    %1420 = vmatpush1.msra.mxu0 0.0
    %1421 = vmatprep.subr.mxu0 0.0
    %1422 = vmatpush1.msra.mxu0 0.0
    %1423 = vmatprep.subr.mxu0 0.0
    %1424 = vmatpush1.msra.mxu0 0.0
    %1425 = vmatprep.subr.mxu0 0.0
    %1426 = vmatpush1.msra.mxu0 0.0
    %1427 = vmatprep.subr.mxu0 0.0
    %1428 = vmatpush1.msra.mxu0 0.0
    %1429 = vmatprep.subr.mxu0 0.0
    %1430 = vmatpush1.msra.mxu0 0.0
    %1431 = vmatprep.subr.mxu0 0.0
    %1432 = vmatpush1.msra.mxu0 0.0
    %1433 = vmatprep.subr.mxu0 0.0
    %1434 = vmatpush1.msra.mxu0 0.0
    %1435 = vmatprep.subr.mxu0 0.0
    %1436 = vmatpush1.msra.mxu0 0.0
    %1437 = vmatprep.subr.mxu0 0.0
    %1438 = vmatpush1.msra.mxu0 0.0
    %1439 = vmatprep.subr.mxu0 0.0
    %1440 = vmatpush1.msra.mxu0 0.0
    %1441 = vmatprep.subr.mxu0 0.0
    %1442 = vmatpush1.msra.mxu0 0.0
    %1443 = vmatprep.subr.mxu0 0.0
    %1444 = vmatpush1.msra.mxu0 0.0
    %1445 = vmatprep.subr.mxu0 0.0
    %1446 = vmatpush1.msra.mxu0 0.0
    %1447 = vmatprep.subr.mxu0 0.0
    %1448 = vmatpush1.msra.mxu0 0.0
    %1449 = vmatprep.subr.mxu0 0.0
    %1450 = vmatpush1.msra.mxu0 0.0
    %1451 = vmatprep.mubr.f32.mxu0 0.0
    %1452 = vmatmul.mubr.f32.gmra.mrb[0].mxu0 %v1385
    %v1453 = vpop.f32.mrb[0].mxu0
    %v1454 = vadd.f32 0.0, %v1453
    %v1455 = vpop.f32.mrb[0].mxu0
    %1456 = vdwg.mxu0
    %v1457 = vadd.f32 %v1042, %v1454
    %v1458 = vxor.u32 %v1457, 2147483648
    %v1459 = vmul.f32 %v1458, 1.442695
    %v1460 = vpow.pop %v1459
    %v1461 = vadd.f32 %v1460, 1.0
    %v1462 = vrcp.pop %v1461
    %v1463 = vmul.f32 1.0, %v1462
    %v1464 = vtanh.pop %v1457
    %v1465 = vmul.f32 %v1463, %v1375
    %1467 = vrot.lane.b32.xlu0 %v1464, 32
    %v1468 = vpop.permute.xlu0 %1467
    %v1470 = vmul.f32 %v1463, %v1468
    %1472 = vrot.lane.b32.xlu0 %v1470, 32
    %v1473 = vpop.permute.xlu0 %1472
    %v1475 = vadd.f32 %v1465, %v1473
    %v1476 = vtanh.pop %v1475
    %1478 = vrot.lane.b32.xlu0 %v1476, 32
    %v1479 = vpop.permute.xlu0 %1478
    %v1481 = vmul.f32 %v1463, %v1479
    %1483 = vrot.lane.b32.xlu0 %v1481, 64
    %v1484 = vpop.permute.xlu0 %1483
    %v1485 = vsel %vm233, %v1484, 0
    %1487 = vmatprep.subr.mxu0 0.0
    %1488 = vmatpush1.msra.mxu0 %v939
    %1489 = vmatprep.subr.mxu0 0.0
    %1490 = vmatpush1.msra.mxu0 %v940
    %1491 = vmatprep.subr.mxu0 0.0
    %1492 = vmatpush1.msra.mxu0 %v941
    %1493 = vmatprep.subr.mxu0 0.0
    %1494 = vmatpush1.msra.mxu0 %v942
    %1495 = vmatprep.subr.mxu0 0.0
    %1496 = vmatpush1.msra.mxu0 0.0
    %1497 = vmatprep.subr.mxu0 0.0
    %1498 = vmatpush1.msra.mxu0 0.0
    %1499 = vmatprep.subr.mxu0 0.0
    %1500 = vmatpush1.msra.mxu0 0.0
    %1501 = vmatprep.subr.mxu0 0.0
    %1502 = vmatpush1.msra.mxu0 0.0
    %1503 = vmatprep.subr.mxu0 0.0
    %1504 = vmatpush1.msra.mxu0 0.0
    %1505 = vmatprep.subr.mxu0 0.0
    %1506 = vmatpush1.msra.mxu0 0.0
    %1507 = vmatprep.subr.mxu0 0.0
    %1508 = vmatpush1.msra.mxu0 0.0
    %1509 = vmatprep.subr.mxu0 0.0
    %1510 = vmatpush1.msra.mxu0 0.0
    %1511 = vmatprep.subr.mxu0 0.0
    %1512 = vmatpush1.msra.mxu0 0.0
    %1513 = vmatprep.subr.mxu0 0.0
    %1514 = vmatpush1.msra.mxu0 0.0
    %1515 = vmatprep.subr.mxu0 0.0
    %1516 = vmatpush1.msra.mxu0 0.0
    %1517 = vmatprep.subr.mxu0 0.0
    %1518 = vmatpush1.msra.mxu0 0.0
    %1519 = vmatprep.subr.mxu0 0.0
    %1520 = vmatpush1.msra.mxu0 0.0
    %1521 = vmatprep.subr.mxu0 0.0
    %1522 = vmatpush1.msra.mxu0 0.0
    %1523 = vmatprep.subr.mxu0 0.0
    %1524 = vmatpush1.msra.mxu0 0.0
    %1525 = vmatprep.subr.mxu0 0.0
    %1526 = vmatpush1.msra.mxu0 0.0
    %1527 = vmatprep.subr.mxu0 0.0
    %1528 = vmatpush1.msra.mxu0 0.0
    %1529 = vmatprep.subr.mxu0 0.0
    %1530 = vmatpush1.msra.mxu0 0.0
    %1531 = vmatprep.subr.mxu0 0.0
    %1532 = vmatpush1.msra.mxu0 0.0
    %1533 = vmatprep.subr.mxu0 0.0
    %1534 = vmatpush1.msra.mxu0 0.0
    %1535 = vmatprep.subr.mxu0 0.0
    %1536 = vmatpush1.msra.mxu0 0.0
    %1537 = vmatprep.subr.mxu0 0.0
    %1538 = vmatpush1.msra.mxu0 0.0
    %1539 = vmatprep.subr.mxu0 0.0
    %1540 = vmatpush1.msra.mxu0 0.0
    %1541 = vmatprep.subr.mxu0 0.0
    %1542 = vmatpush1.msra.mxu0 0.0
    %1543 = vmatprep.subr.mxu0 0.0
    %1544 = vmatpush1.msra.mxu0 0.0
    %1545 = vmatprep.subr.mxu0 0.0
    %1546 = vmatpush1.msra.mxu0 0.0
    %1547 = vmatprep.subr.mxu0 0.0
    %1548 = vmatpush1.msra.mxu0 0.0
    %1549 = vmatprep.subr.mxu0 0.0
    %1550 = vmatpush1.msra.mxu0 0.0
    %1551 = vmatprep.mubr.f32.mxu0 0.0
    %1552 = vmatmul.mubr.f32.gmra.mrb[0].mxu0 %v1485
    %v1553 = vpop.f32.mrb[0].mxu0
    %v1554 = vadd.f32 0.0, %v1553
    %v1555 = vpop.f32.mrb[0].mxu0
    %1556 = vdwg.mxu0
    %v1557 = vadd.f32 %v1047, %v1554
    %v1558 = vxor.u32 %v1557, 2147483648
    %v1559 = vmul.f32 %v1558, 1.442695
    %v1560 = vpow.pop %v1559
    %v1561 = vadd.f32 %v1560, 1.0
    %v1562 = vrcp.pop %v1561
    %v1563 = vmul.f32 1.0, %v1562
    %v1564 = vtanh.pop %v1557
    %v1565 = vmul.f32 %v1563, %v1475
    %1567 = vrot.lane.b32.xlu0 %v1564, 32
    %v1568 = vpop.permute.xlu0 %1567
    %v1570 = vmul.f32 %v1563, %v1568
    %1572 = vrot.lane.b32.xlu0 %v1570, 32
    %v1573 = vpop.permute.xlu0 %1572
    %v1575 = vadd.f32 %v1565, %v1573
    %v1576 = vtanh.pop %v1575
    %1578 = vrot.lane.b32.xlu0 %v1576, 32
    %v1579 = vpop.permute.xlu0 %1578
    %v1581 = vmul.f32 %v1563, %v1579
    %1583 = vrot.lane.b32.xlu0 %v1581, 64
    %v1584 = vpop.permute.xlu0 %1583
    %v1585 = vsel %vm233, %v1584, 0
    %1587 = vmatprep.subr.mxu0 0.0
    %1588 = vmatpush1.msra.mxu0 %v939
    %1589 = vmatprep.subr.mxu0 0.0
    %1590 = vmatpush1.msra.mxu0 %v940
    %1591 = vmatprep.subr.mxu0 0.0
    %1592 = vmatpush1.msra.mxu0 %v941
    %1593 = vmatprep.subr.mxu0 0.0
    %1594 = vmatpush1.msra.mxu0 %v942
    %1595 = vmatprep.subr.mxu0 0.0
    %1596 = vmatpush1.msra.mxu0 0.0
    %1597 = vmatprep.subr.mxu0 0.0
    %1598 = vmatpush1.msra.mxu0 0.0
    %1599 = vmatprep.subr.mxu0 0.0
    %1600 = vmatpush1.msra.mxu0 0.0
    %1601 = vmatprep.subr.mxu0 0.0
    %1602 = vmatpush1.msra.mxu0 0.0
    %1603 = vmatprep.subr.mxu0 0.0
    %1604 = vmatpush1.msra.mxu0 0.0
    %1605 = vmatprep.subr.mxu0 0.0
    %1606 = vmatpush1.msra.mxu0 0.0
    %1607 = vmatprep.subr.mxu0 0.0
    %1608 = vmatpush1.msra.mxu0 0.0
    %1609 = vmatprep.subr.mxu0 0.0
    %1610 = vmatpush1.msra.mxu0 0.0
    %1611 = vmatprep.subr.mxu0 0.0
    %1612 = vmatpush1.msra.mxu0 0.0
    %1613 = vmatprep.subr.mxu0 0.0
    %1614 = vmatpush1.msra.mxu0 0.0
    %1615 = vmatprep.subr.mxu0 0.0
    %1616 = vmatpush1.msra.mxu0 0.0
    %1617 = vmatprep.subr.mxu0 0.0
    %1618 = vmatpush1.msra.mxu0 0.0
    %1619 = vmatprep.subr.mxu0 0.0
    %1620 = vmatpush1.msra.mxu0 0.0
    %1621 = vmatprep.subr.mxu0 0.0
    %1622 = vmatpush1.msra.mxu0 0.0
    %1623 = vmatprep.subr.mxu0 0.0
    %1624 = vmatpush1.msra.mxu0 0.0
    %1625 = vmatprep.subr.mxu0 0.0
    %1626 = vmatpush1.msra.mxu0 0.0
    %1627 = vmatprep.subr.mxu0 0.0
    %1628 = vmatpush1.msra.mxu0 0.0
    %1629 = vmatprep.subr.mxu0 0.0
    %1630 = vmatpush1.msra.mxu0 0.0
    %1631 = vmatprep.subr.mxu0 0.0
    %1632 = vmatpush1.msra.mxu0 0.0
    %1633 = vmatprep.subr.mxu0 0.0
    %1634 = vmatpush1.msra.mxu0 0.0
    %1635 = vmatprep.subr.mxu0 0.0
    %1636 = vmatpush1.msra.mxu0 0.0
    %1637 = vmatprep.subr.mxu0 0.0
    %1638 = vmatpush1.msra.mxu0 0.0
    %1639 = vmatprep.subr.mxu0 0.0
    %1640 = vmatpush1.msra.mxu0 0.0
    %1641 = vmatprep.subr.mxu0 0.0
    %1642 = vmatpush1.msra.mxu0 0.0
    %1643 = vmatprep.subr.mxu0 0.0
    %1644 = vmatpush1.msra.mxu0 0.0
    %1645 = vmatprep.subr.mxu0 0.0
    %1646 = vmatpush1.msra.mxu0 0.0
    %1647 = vmatprep.subr.mxu0 0.0
    %1648 = vmatpush1.msra.mxu0 0.0
    %1649 = vmatprep.subr.mxu0 0.0
    %1650 = vmatpush1.msra.mxu0 0.0
    %1651 = vmatprep.mubr.f32.mxu0 0.0
    %1652 = vmatmul.mubr.f32.gmra.mrb[0].mxu0 %v1585
    %v1653 = vpop.f32.mrb[0].mxu0
    %v1654 = vadd.f32 0.0, %v1653
    %v1655 = vpop.f32.mrb[0].mxu0
    %1656 = vdwg.mxu0
    %v1657 = vadd.f32 %v1052, %v1654
    %v1658 = vxor.u32 %v1657, 2147483648
    %v1659 = vmul.f32 %v1658, 1.442695
    %v1660 = vpow.pop %v1659
    %v1661 = vadd.f32 %v1660, 1.0
    %v1662 = vrcp.pop %v1661
    %v1663 = vmul.f32 1.0, %v1662
    %v1664 = vtanh.pop %v1657
    %v1665 = vmul.f32 %v1663, %v1575
    %1667 = vrot.lane.b32.xlu0 %v1664, 32
    %v1668 = vpop.permute.xlu0 %1667
    %v1670 = vmul.f32 %v1663, %v1668
    %1672 = vrot.lane.b32.xlu0 %v1670, 32
    %v1673 = vpop.permute.xlu0 %1672
    %v1675 = vadd.f32 %v1665, %v1673
    %v1676 = vtanh.pop %v1675
    %1678 = vrot.lane.b32.xlu0 %v1676, 32
    %v1679 = vpop.permute.xlu0 %1678
    %v1681 = vmul.f32 %v1663, %v1679
    %1683 = vrot.lane.b32.xlu0 %v1681, 64
    %v1684 = vpop.permute.xlu0 %1683
    %v1685 = vsel %vm233, %v1684, 0
    %1687 = vmatprep.subr.mxu0 0.0
    %1688 = vmatpush1.msra.mxu0 %v939
    %1689 = vmatprep.subr.mxu0 0.0
    %1690 = vmatpush1.msra.mxu0 %v940
    %1691 = vmatprep.subr.mxu0 0.0
    %1692 = vmatpush1.msra.mxu0 %v941
    %1693 = vmatprep.subr.mxu0 0.0
    %1694 = vmatpush1.msra.mxu0 %v942
    %1695 = vmatprep.subr.mxu0 0.0
    %1696 = vmatpush1.msra.mxu0 0.0
    %1697 = vmatprep.subr.mxu0 0.0
    %1698 = vmatpush1.msra.mxu0 0.0
    %1699 = vmatprep.subr.mxu0 0.0
    %1700 = vmatpush1.msra.mxu0 0.0
    %1701 = vmatprep.subr.mxu0 0.0
    %1702 = vmatpush1.msra.mxu0 0.0
    %1703 = vmatprep.subr.mxu0 0.0
    %1704 = vmatpush1.msra.mxu0 0.0
    %1705 = vmatprep.subr.mxu0 0.0
    %1706 = vmatpush1.msra.mxu0 0.0
    %1707 = vmatprep.subr.mxu0 0.0
    %1708 = vmatpush1.msra.mxu0 0.0
    %1709 = vmatprep.subr.mxu0 0.0
    %1710 = vmatpush1.msra.mxu0 0.0
    %1711 = vmatprep.subr.mxu0 0.0
    %1712 = vmatpush1.msra.mxu0 0.0
    %1713 = vmatprep.subr.mxu0 0.0
    %1714 = vmatpush1.msra.mxu0 0.0
    %1715 = vmatprep.subr.mxu0 0.0
    %1716 = vmatpush1.msra.mxu0 0.0
    %1717 = vmatprep.subr.mxu0 0.0
    %1718 = vmatpush1.msra.mxu0 0.0
    %1719 = vmatprep.subr.mxu0 0.0
    %1720 = vmatpush1.msra.mxu0 0.0
    %1721 = vmatprep.subr.mxu0 0.0
    %1722 = vmatpush1.msra.mxu0 0.0
    %1723 = vmatprep.subr.mxu0 0.0
    %1724 = vmatpush1.msra.mxu0 0.0
    %1725 = vmatprep.subr.mxu0 0.0
    %1726 = vmatpush1.msra.mxu0 0.0
    %1727 = vmatprep.subr.mxu0 0.0
    %1728 = vmatpush1.msra.mxu0 0.0
    %1729 = vmatprep.subr.mxu0 0.0
    %1730 = vmatpush1.msra.mxu0 0.0
    %1731 = vmatprep.subr.mxu0 0.0
    %1732 = vmatpush1.msra.mxu0 0.0
    %1733 = vmatprep.subr.mxu0 0.0
    %1734 = vmatpush1.msra.mxu0 0.0
    %1735 = vmatprep.subr.mxu0 0.0
    %1736 = vmatpush1.msra.mxu0 0.0
    %1737 = vmatprep.subr.mxu0 0.0
    %1738 = vmatpush1.msra.mxu0 0.0
    %1739 = vmatprep.subr.mxu0 0.0
    %1740 = vmatpush1.msra.mxu0 0.0
    %1741 = vmatprep.subr.mxu0 0.0
    %1742 = vmatpush1.msra.mxu0 0.0
    %1743 = vmatprep.subr.mxu0 0.0
    %1744 = vmatpush1.msra.mxu0 0.0
    %1745 = vmatprep.subr.mxu0 0.0
    %1746 = vmatpush1.msra.mxu0 0.0
    %1747 = vmatprep.subr.mxu0 0.0
    %1748 = vmatpush1.msra.mxu0 0.0
    %1749 = vmatprep.subr.mxu0 0.0
    %1750 = vmatpush1.msra.mxu0 0.0
    %1751 = vmatprep.mubr.f32.mxu0 0.0
    %1752 = vmatmul.mubr.f32.gmra.mrb[0].mxu0 %v1685
    %v1753 = vpop.f32.mrb[0].mxu0
    %v1754 = vadd.f32 0.0, %v1753
    %v1755 = vpop.f32.mrb[0].mxu0
    %1756 = vdwg.mxu0
    %v1757 = vadd.f32 %v1057, %v1754
    %v1758 = vxor.u32 %v1757, 2147483648
    %v1759 = vmul.f32 %v1758, 1.442695
    %v1760 = vpow.pop %v1759
    %v1761 = vadd.f32 %v1760, 1.0
    %v1762 = vrcp.pop %v1761
    %v1763 = vmul.f32 1.0, %v1762
    %v1764 = vtanh.pop %v1757
    %v1765 = vmul.f32 %v1763, %v1675
    %1767 = vrot.lane.b32.xlu0 %v1764, 32
    %v1768 = vpop.permute.xlu0 %1767
    %v1770 = vmul.f32 %v1763, %v1768
    %1772 = vrot.lane.b32.xlu0 %v1770, 32
    %v1773 = vpop.permute.xlu0 %1772
    %v1775 = vadd.f32 %v1765, %v1773
    %v1776 = vtanh.pop %v1775
    %1778 = vrot.lane.b32.xlu0 %v1776, 32
    %v1779 = vpop.permute.xlu0 %1778
    %v1781 = vmul.f32 %v1763, %v1779
    %v1782 = vld [vmem:[#allocation5] sm:$0xff]
    %v1783 = vld [vmem:[#allocation5 + $0x8] sm:$0xff]
    %v1784 = vld [vmem:[#allocation5 + $0x10] sm:$0xff]
    %v1785 = vld [vmem:[#allocation5 + $0x18] sm:$0xff]
    %v1786 = vld [vmem:[%s8] sm:$0x1]
    %v1788 = vlaneseq
    %v1789 = vshrl.u32 %v1788, 7
    %v1790 = vsub.s32 0, %v1789
    %v1791 = vrot.slane %v1786, %v1790
    %1794 = vrot.lane.b32.xlu0 %v1781, 64
    %v1795 = vpop.permute.xlu0 %1794
    %v1796 = vsel %vm233, %v1795, 0
    %1798 = vmatprep.subr.mxu0 0.0
    %1799 = vmatpush1.msra.mxu0 %v1782
    %1800 = vmatprep.subr.mxu0 0.0
    %1801 = vmatpush1.msra.mxu0 %v1783
    %1802 = vmatprep.subr.mxu0 0.0
    %1803 = vmatpush1.msra.mxu0 %v1784
    %1804 = vmatprep.subr.mxu0 0.0
    %1805 = vmatpush1.msra.mxu0 %v1785
    %1806 = vmatprep.subr.mxu0 0.0
    %1807 = vmatpush1.msra.mxu0 0.0
    %1808 = vmatprep.subr.mxu0 0.0
    %1809 = vmatpush1.msra.mxu0 0.0
    %1810 = vmatprep.subr.mxu0 0.0
    %1811 = vmatpush1.msra.mxu0 0.0
    %1812 = vmatprep.subr.mxu0 0.0
    %1813 = vmatpush1.msra.mxu0 0.0
    %1814 = vmatprep.subr.mxu0 0.0
    %1815 = vmatpush1.msra.mxu0 0.0
    %1816 = vmatprep.subr.mxu0 0.0
    %1817 = vmatpush1.msra.mxu0 0.0
    %1818 = vmatprep.subr.mxu0 0.0
    %1819 = vmatpush1.msra.mxu0 0.0
    %1820 = vmatprep.subr.mxu0 0.0
    %1821 = vmatpush1.msra.mxu0 0.0
    %1822 = vmatprep.subr.mxu0 0.0
    %1823 = vmatpush1.msra.mxu0 0.0
    %1824 = vmatprep.subr.mxu0 0.0
    %1825 = vmatpush1.msra.mxu0 0.0
    %1826 = vmatprep.subr.mxu0 0.0
    %1827 = vmatpush1.msra.mxu0 0.0
    %1828 = vmatprep.subr.mxu0 0.0
    %1829 = vmatpush1.msra.mxu0 0.0
    %1830 = vmatprep.subr.mxu0 0.0
    %1831 = vmatpush1.msra.mxu0 0.0
    %1832 = vmatprep.subr.mxu0 0.0
    %1833 = vmatpush1.msra.mxu0 0.0
    %1834 = vmatprep.subr.mxu0 0.0
    %1835 = vmatpush1.msra.mxu0 0.0
    %1836 = vmatprep.subr.mxu0 0.0
    %1837 = vmatpush1.msra.mxu0 0.0
    %1838 = vmatprep.subr.mxu0 0.0
    %1839 = vmatpush1.msra.mxu0 0.0
    %1840 = vmatprep.subr.mxu0 0.0
    %1841 = vmatpush1.msra.mxu0 0.0
    %1842 = vmatprep.subr.mxu0 0.0
    %1843 = vmatpush1.msra.mxu0 0.0
    %1844 = vmatprep.subr.mxu0 0.0
    %1845 = vmatpush1.msra.mxu0 0.0
    %1846 = vmatprep.subr.mxu0 0.0
    %1847 = vmatpush1.msra.mxu0 0.0
    %1848 = vmatprep.subr.mxu0 0.0
    %1849 = vmatpush1.msra.mxu0 0.0
    %1850 = vmatprep.subr.mxu0 0.0
    %1851 = vmatpush1.msra.mxu0 0.0
    %1852 = vmatprep.subr.mxu0 0.0
    %1853 = vmatpush1.msra.mxu0 0.0
    %1854 = vmatprep.subr.mxu0 0.0
    %1855 = vmatpush1.msra.mxu0 0.0
    %1856 = vmatprep.subr.mxu0 0.0
    %1857 = vmatpush1.msra.mxu0 0.0
    %1858 = vmatprep.subr.mxu0 0.0
    %1859 = vmatpush1.msra.mxu0 0.0
    %1860 = vmatprep.subr.mxu0 0.0
    %1861 = vmatpush1.msra.mxu0 0.0
    %1862 = vmatprep.mubr.f32.mxu0 0.0
    %1863 = vmatmul.mubr.f32.gmra.mrb[0].mxu0 %v1796
    %v1864 = vpop.f32.mrb[0].mxu0
    %v1865 = vadd.f32 %v1791, %v1864
    %v1866 = vpop.f32.mrb[0].mxu0
    %1867 = vdwg.mxu0
    %1868 = vst [vmem:[#allocation7] sm:$0xff] %v1865
    // Predicated region
    $region46: #{tpu_custom_call.1} parent=1 // pred_check
      _
    $region47: #{tpu_custom_call.1} parent=1 // pred_check_branch
      %1870 = sbr.rel (0) target = $region49
    $region48: #{tpu_custom_call.1} parent=1 // pred_region
      %s1872 = ssub.s32 128, 128
      %1873 = vsyncadd [#allocation4], %s1872
      %s1875 = sshll.u32 [#allocation7], 4
      %s1876 = int_to_ptr.vmem [resolvable:$true] %s1875
      %1878 = dma.vmem_to_hbm [thread:$0]  %s1876, 128, %s9, [#allocation4]
    $region49: #{tpu_custom_call.1} parent=1 // pred_fallthru
      _
    // Predicated region
    $region50: #{tpu_custom_call.1} parent=1 // pred_check
      _
    $region51: #{tpu_custom_call.1} parent=1 // pred_check_branch
      %1880 = sbr.rel (0) target = $region53
    $region52: #{tpu_custom_call.1} parent=1 // pred_region
      %1881 = dma.done [#allocation4], 128
    $region53: #{tpu_custom_call.1} parent=1 // pred_fallthru
      _
    %1882 = vsyncpa [#allocation3], 1
    %1883 = vsyncpa [#allocation6], 1
    %1884 = vsyncpa [#allocation4], 1

</llo_original>
